<compile_context>
chip_gen: v7x
topology: tpu7x:2x2x1
jax: 0.10.0
libtpu: 0.0.40
codegen_flags: <defaults>
</compile_context>

<pallas_src>
from functools import partial

import jax
import jax.numpy as jnp
from jax.experimental import pallas as pl
from jax.experimental.pallas import tpu as pltpu

LANE = 128


def mlp_kernel(x_ref, w1_ref, b1_ref, w2_ref, b2_ref, w3_ref, b3_ref, o_ref):
    # fc1 + ReLU   (bf16 operands, f32 accumulation on the MXU)
    h = jnp.dot(x_ref[...], w1_ref[...], preferred_element_type=jnp.float32)
    h = jnp.maximum(h + b1_ref[...], 0.0)
    # fc2 + ReLU
    h = jnp.dot(h.astype(jnp.bfloat16), w2_ref[...],
                preferred_element_type=jnp.float32)
    h = jnp.maximum(h + b2_ref[...], 0.0)
    # fc3 (logits, no activation) — lane-dense (batch_tile, 128) store
    o = jnp.dot(h.astype(jnp.bfloat16), w3_ref[...],
                preferred_element_type=jnp.float32)
    o_ref[...] = (o + b3_ref[...]).astype(o_ref.dtype)


def _round_up(n, m):
    return ((n + m - 1) // m) * m


@partial(jax.jit, static_argnames=("batch_tile",))
def neural_net_forward(x, w1, b1, w2, b2, w3, b3, *, batch_tile=128):
    """x: [B, D_in] f32; w*: [in, out] f32; b*: [out] f32. Returns [B, C] f32 logits."""
    B, D_in = x.shape
    H = w1.shape[1]
    C = w3.shape[1]

    # Adaptive batch tile: never larger than needed (tiny batches pad only to a
    # sublane multiple of 8), capped at the requested tile for large batches.
    bt = max(8, min(_round_up(batch_tile, 8), _round_up(B, 8)))

    # Padded sizes: features/classes -> multiple of 128 lanes, batch -> multiple
    # of the batch tile. Zero padding preserves the math exactly.
    K = _round_up(D_in, LANE)          # 784 -> 896
    Cp = _round_up(C, LANE)            # 10  -> 128
    Bp = _round_up(B, bt)

    xp = jnp.zeros((Bp, K), jnp.bfloat16).at[:B, :D_in].set(x.astype(jnp.bfloat16))
    w1p = jnp.zeros((K, H), jnp.bfloat16).at[:D_in, :].set(w1.astype(jnp.bfloat16))
    w2p = w2.astype(jnp.bfloat16)
    w3p = jnp.zeros((H, Cp), jnp.bfloat16).at[:, :C].set(w3.astype(jnp.bfloat16))
    b1p = b1.astype(jnp.float32).reshape(1, H)
    b2p = b2.astype(jnp.float32).reshape(1, H)
    b3p = jnp.zeros((1, Cp), jnp.float32).at[:, :C].set(
        b3.astype(jnp.float32).reshape(1, C))

    grid = (Bp // bt,)

    # x / out are tiled over the batch axis; weights and biases are whole-array
    # blocks that stay resident in VMEM across all grid steps (constant index_map).
    in_specs = [
        pl.BlockSpec((bt, K), lambda i: (i, 0)),     # x tile (bf16)
        pl.BlockSpec((K, H), lambda i: (0, 0)),      # w1 (bf16)
        pl.BlockSpec((1, H), lambda i: (0, 0)),      # b1 (f32)
        pl.BlockSpec((H, H), lambda i: (0, 0)),      # w2 (bf16)
        pl.BlockSpec((1, H), lambda i: (0, 0)),      # b2 (f32)
        pl.BlockSpec((H, Cp), lambda i: (0, 0)),     # w3 (bf16, class-padded)
        pl.BlockSpec((1, Cp), lambda i: (0, 0)),     # b3 (f32, class-padded)
    ]
    out_spec = pl.BlockSpec((bt, Cp), lambda i: (i, 0))

    out_padded = pl.pallas_call(
        mlp_kernel,
        out_shape=jax.ShapeDtypeStruct((Bp, Cp), jnp.float32),
        grid_spec=pltpu.PrefetchScalarGridSpec(
            num_scalar_prefetch=0,
            grid=grid,
            in_specs=in_specs,
            out_specs=out_spec,
        ),
        compiler_params=pltpu.CompilerParams(
            dimension_semantics=("parallel",),      # batch steps can shard across TCs
            vmem_limit_bytes=32 * 1024 * 1024,      # headroom for larger batch tiles
        ),
    )(xp, w1p, b1p, w2p, b2p, w3p, b3p)

    # Strip batch / class padding.
    return out_padded[:B, :C]


def reference_forward(x, w1, b1, w2, b2, w3, b3):
    h = jnp.maximum(x @ w1 + b1, 0.0)
    h = jnp.maximum(h @ w2 + b2, 0.0)
    return h @ w3 + b3


if __name__ == "__main__":
    input_size = 28 * 28   # 784
    hidden_size = 128
    num_classes = 10
    batch = 256            # -> grid of 2 parallel batch steps at batch_tile=128

    key = jax.random.PRNGKey(0)
    kx, k1, k2, k3, kb1, kb2, kb3 = jax.random.split(key, 7)

    # Deterministic synthetic parameters (nn.Linear shapes, stored transposed).
    x = jax.random.normal(kx, (batch, input_size), dtype=jnp.float32)
    w1 = jax.random.normal(k1, (input_size, hidden_size), dtype=jnp.float32) * 0.02
    b1 = jax.random.normal(kb1, (hidden_size,), dtype=jnp.float32) * 0.01
    w2 = jax.random.normal(k2, (hidden_size, hidden_size), dtype=jnp.float32) * 0.02
    b2 = jax.random.normal(kb2, (hidden_size,), dtype=jnp.float32) * 0.01
    w3 = jax.random.normal(k3, (hidden_size, num_classes), dtype=jnp.float32) * 0.02
    b3 = jax.random.normal(kb3, (num_classes,), dtype=jnp.float32) * 0.01

    out = neural_net_forward(x, w1, b1, w2, b2, w3, b3, batch_tile=128)
    out = jax.block_until_ready(out)

    ref = reference_forward(x, w1, b1, w2, b2, w3, b3)
    assert out.shape == (batch, num_classes)
    # bf16 operands vs f32 reference -> loosened tolerance.
    max_err = float(jnp.max(jnp.abs(out - ref)))
    assert jnp.allclose(out, ref, atol=3e-2, rtol=3e-2), f"max abs err {max_err}"

    print("KERNEL_OK")
</pallas_src>

<mosaic_0001>
module attributes {stable_mosaic.version = 11 : i64} {
  func.func @mlp_kernel(%arg0: i32, %arg1: memref<128x896xbf16, #tpu.memory_space<vmem>>, %arg2: memref<896x128xbf16, #tpu.memory_space<vmem>>, %arg3: memref<1x128xf32, #tpu.memory_space<vmem>>, %arg4: memref<128x128xbf16, #tpu.memory_space<vmem>>, %arg5: memref<1x128xf32, #tpu.memory_space<vmem>>, %arg6: memref<128x128xbf16, #tpu.memory_space<vmem>>, %arg7: memref<1x128xf32, #tpu.memory_space<vmem>>, %arg8: memref<128x128xf32, #tpu.memory_space<vmem>>) attributes {dimension_semantics = [#tpu.dimension_semantics<parallel>], iteration_bounds = array<i64: 2>, scalar_prefetch = 0 : i64, scratch_operands = 0 : i64, tpu.core_type = #tpu.core_type<tc>, window_params = [{transform_indices = @transform_0, window_bounds = array<i64: 128, 896>}, {pipeline_mode = #tpu.pipeline_mode<synchronous>, transform_indices = @transform_1, window_bounds = array<i64: 896, 128>}, {pipeline_mode = #tpu.pipeline_mode<synchronous>, transform_indices = @transform_2, window_bounds = array<i64: 1, 128>}, {pipeline_mode = #tpu.pipeline_mode<synchronous>, transform_indices = @transform_3, window_bounds = array<i64: 128, 128>}, {pipeline_mode = #tpu.pipeline_mode<synchronous>, transform_indices = @transform_4, window_bounds = array<i64: 1, 128>}, {pipeline_mode = #tpu.pipeline_mode<synchronous>, transform_indices = @transform_5, window_bounds = array<i64: 128, 128>}, {pipeline_mode = #tpu.pipeline_mode<synchronous>, transform_indices = @transform_6, window_bounds = array<i64: 1, 128>}, {transform_indices = @transform_7, window_bounds = array<i64: 128, 128>}]} {
    %c0 = arith.constant 0 : index
    %c0_0 = arith.constant 0 : index
    %0 = vector.load %arg1[%c0, %c0_0] : memref<128x896xbf16, #tpu.memory_space<vmem>>, vector<128x896xbf16>
    %c0_1 = arith.constant 0 : index
    %c0_2 = arith.constant 0 : index
    %1 = vector.load %arg2[%c0_1, %c0_2] : memref<896x128xbf16, #tpu.memory_space<vmem>>, vector<896x128xbf16>
    %cst = arith.constant dense<0.000000e+00> : vector<128x128xf32>
    %2 = tpu.matmul %0, %1, %cst {dimension_numbers = #tpu.dot_dimension_numbers<[1], [0], [0], [1], [0, 0, 1, 1], [], []>} : vector<128x896xbf16>, vector<896x128xbf16>, vector<128x128xf32> -> vector<128x128xf32>
    %c0_3 = arith.constant 0 : index
    %c0_4 = arith.constant 0 : index
    %3 = vector.load %arg3[%c0_3, %c0_4] : memref<1x128xf32, #tpu.memory_space<vmem>>, vector<1x128xf32>
    %4 = vector.broadcast %3 : vector<1x128xf32> to vector<128x128xf32>
    %5 = arith.addf %2, %4 : vector<128x128xf32>
    %cst_5 = arith.constant 0.000000e+00 : f32
    %6 = vector.broadcast %cst_5 : f32 to vector<128x128xf32>
    %7 = arith.maximumf %5, %6 : vector<128x128xf32>
    %8 = arith.truncf %7 : vector<128x128xf32> to vector<128x128xbf16>
    %c0_6 = arith.constant 0 : index
    %c0_7 = arith.constant 0 : index
    %9 = vector.load %arg4[%c0_6, %c0_7] : memref<128x128xbf16, #tpu.memory_space<vmem>>, vector<128x128xbf16>
    %cst_8 = arith.constant dense<0.000000e+00> : vector<128x128xf32>
    %10 = tpu.matmul %8, %9, %cst_8 {dimension_numbers = #tpu.dot_dimension_numbers<[1], [0], [0], [1], [0, 0, 1, 1], [], []>} : vector<128x128xbf16>, vector<128x128xbf16>, vector<128x128xf32> -> vector<128x128xf32>
    %c0_9 = arith.constant 0 : index
    %c0_10 = arith.constant 0 : index
    %11 = vector.load %arg5[%c0_9, %c0_10] : memref<1x128xf32, #tpu.memory_space<vmem>>, vector<1x128xf32>
    %12 = vector.broadcast %11 : vector<1x128xf32> to vector<128x128xf32>
    %13 = arith.addf %10, %12 : vector<128x128xf32>
    %cst_11 = arith.constant 0.000000e+00 : f32
    %14 = vector.broadcast %cst_11 : f32 to vector<128x128xf32>
    %15 = arith.maximumf %13, %14 : vector<128x128xf32>
    %16 = arith.truncf %15 : vector<128x128xf32> to vector<128x128xbf16>
    %c0_12 = arith.constant 0 : index
    %c0_13 = arith.constant 0 : index
    %17 = vector.load %arg6[%c0_12, %c0_13] : memref<128x128xbf16, #tpu.memory_space<vmem>>, vector<128x128xbf16>
    %cst_14 = arith.constant dense<0.000000e+00> : vector<128x128xf32>
    %18 = tpu.matmul %16, %17, %cst_14 {dimension_numbers = #tpu.dot_dimension_numbers<[1], [0], [0], [1], [0, 0, 1, 1], [], []>} : vector<128x128xbf16>, vector<128x128xbf16>, vector<128x128xf32> -> vector<128x128xf32>
    %c0_15 = arith.constant 0 : index
    %c0_16 = arith.constant 0 : index
    %19 = vector.load %arg7[%c0_15, %c0_16] : memref<1x128xf32, #tpu.memory_space<vmem>>, vector<1x128xf32>
    %20 = vector.broadcast %19 : vector<1x128xf32> to vector<128x128xf32>
    %21 = arith.addf %18, %20 : vector<128x128xf32>
    %c0_17 = arith.constant 0 : index
    %c0_18 = arith.constant 0 : index
    %22 = vector.load %arg8[%c0_17, %c0_18] : memref<128x128xf32, #tpu.memory_space<vmem>>, vector<128x128xf32>
    tpu.vector_store %arg8[%c0_17, %c0_18], %21 {strides = array<i32>} : memref<128x128xf32, #tpu.memory_space<vmem>>, vector<128x128xf32>,
    return
  }
  func.func @transform_0(%arg0: i32) -> (i32, i32) {
    %c0_i32 = arith.constant 0 : i32
    %c0_i32_0 = arith.constant 0 : i32
    return %arg0, %c0_i32 : i32, i32
  }
  func.func @transform_1(%arg0: i32) -> (i32, i32) {
    %c0_i32 = arith.constant 0 : i32
    %c0_i32_0 = arith.constant 0 : i32
    %c0_i32_1 = arith.constant 0 : i32
    return %c0_i32, %c0_i32_0 : i32, i32
  }
  func.func @transform_2(%arg0: i32) -> (i32, i32) {
    %c0_i32 = arith.constant 0 : i32
    %c0_i32_0 = arith.constant 0 : i32
    %c0_i32_1 = arith.constant 0 : i32
    return %c0_i32, %c0_i32_0 : i32, i32
  }
  func.func @transform_3(%arg0: i32) -> (i32, i32) {
    %c0_i32 = arith.constant 0 : i32
    %c0_i32_0 = arith.constant 0 : i32
    %c0_i32_1 = arith.constant 0 : i32
    return %c0_i32, %c0_i32_0 : i32, i32
  }
  func.func @transform_4(%arg0: i32) -> (i32, i32) {
    %c0_i32 = arith.constant 0 : i32
    %c0_i32_0 = arith.constant 0 : i32
    %c0_i32_1 = arith.constant 0 : i32
    return %c0_i32, %c0_i32_0 : i32, i32
  }
  func.func @transform_5(%arg0: i32) -> (i32, i32) {
    %c0_i32 = arith.constant 0 : i32
    %c0_i32_0 = arith.constant 0 : i32
    %c0_i32_1 = arith.constant 0 : i32
    return %c0_i32, %c0_i32_0 : i32, i32
  }
  func.func @transform_6(%arg0: i32) -> (i32, i32) {
    %c0_i32 = arith.constant 0 : i32
    %c0_i32_0 = arith.constant 0 : i32
    %c0_i32_1 = arith.constant 0 : i32
    return %c0_i32, %c0_i32_0 : i32, i32
  }
  func.func @transform_7(%arg0: i32) -> (i32, i32) {
    %c0_i32 = arith.constant 0 : i32
    %c0_i32_0 = arith.constant 0 : i32
    return %arg0, %c0_i32 : i32, i32
  }
}

</mosaic_0001>

<llo_original>
// kernel: neural_net_forward.1
$region0: #{neural_net_forward.1}
  #allocation0 [shape = 'u32[]', space=smem, size = 0x4, offset = 0x4, fixed_abs, tag = 'smem constant byte address 0x4 - core index']
  #allocation1 [shape = 'u32[144,128]{1,0:T(1,128)}', space=vmem, size = 0x12000, scoped, tag = 'internal scratch']
  %s0 = inlined_call_operand.vmem [shape: bf16[256,896], index: 0, kind: input, shape index: {}]
  %s1 = inlined_call_operand.vmem [shape: bf16[896,128], index: 1, kind: input, shape index: {}]
  %s2 = inlined_call_operand.vmem [shape: f32[1,128], index: 2, kind: input, shape index: {}]
  %s3 = inlined_call_operand.vmem [shape: bf16[128,128], index: 3, kind: input, shape index: {}]
  %s4 = inlined_call_operand.vmem [shape: f32[1,128], index: 4, kind: input, shape index: {}]
  %s5 = inlined_call_operand.vmem [shape: bf16[128,128], index: 5, kind: input, shape index: {}]
  %s6 = inlined_call_operand.vmem [shape: f32[1,128], index: 6, kind: input, shape index: {}]
  %s7 = inlined_call_operand.vmem [shape: f32[256,128], index: 7, kind: output, shape index: {}]
  %s8 = sld [smem:[#allocation0]]
  $region61: #{neural_net_forward.1} parent=0
    _
  %s10 = ssub.s32 1, %s8
  %s11 = scalar_select 0, %s10, %s8
  loop: start=0, step=1, limit=4
  $region2: #{neural_net_forward.1} parent=0 // loop_pre_header
    _
  $region3: #{neural_net_forward.1} parent=0 // loop_header
    %s13 = sphi 0, %s17
    %p14 = scmp.ge.s32.totalorder %s13, 4
    %s23 = sphi 0, %s25
    %s26 = sphi 0, %s23
    %s27 = sphi 0, %s26
    %s43 = sphi 0, %s27
    %s47 = sphi 0, %s47
    %s49 = sphi 0, %s47
    %s50 = sphi 0, %s49
    %s64 = sphi 0, %s50
    %s68 = sphi 0, %s68
    %s70 = sphi 0, %s68
    %s71 = sphi 0, %s70
    %s85 = sphi 0, %s71
    %s89 = sphi 0, %s89
    %s91 = sphi 0, %s89
    %s92 = sphi 0, %s91
    %s106 = sphi 0, %s92
    %s110 = sphi 0, %s110
    %s112 = sphi 0, %s110
    %s113 = sphi 0, %s112
    %s127 = sphi 0, %s113
    %s131 = sphi 0, %s131
    %s133 = sphi 0, %s131
    %s134 = sphi 0, %s133
    %s148 = sphi 0, %s134
    %s152 = sphi 0, %s152
    %s154 = sphi 0, %s152
    %s155 = sphi 0, %s154
    %s169 = sphi 0, %s155
    %s175 = sphi 0, %s177
    %s178 = sphi 0, %s175
    %s179 = sphi 0, %s178
    %s195 = sphi 0, %s179
  $region4: #{neural_net_forward.1} parent=0 // loop_header_branch
    %16 = sbr.rel (%p14) target = $region8
  $region5: #{neural_net_forward.1} parent=0 // loop_body
    %s18 = ssub.s32 %s13, 1
    %s19 = ssub.s32 %s13, 2
    %s20 = sadd.s32 %s13, 1
    %s21 = ssub.s32 %s13, %s20
    %p22 = scmp.eq.s32.totalorder %s21, 0
    %s24 = sadd.s32 %s23, 1
    %s25 = scalar_select %p22, %s23, %s24
    %p28 = pneg %p22
    %p29 = scmp.eq.s32.totalorder %s13, 1
    %p30 = por %p28, %p29
    %p31 = scmp.ne.s32.totalorder %s23, %s26
    %p32 = scmp.eq.s32.totalorder %s13, 0
    %p33 = por %p31, %p32
    %p34 = scmp.ne.s32.totalorder %s23, %s26
    %p35 = scmp.eq.s32.totalorder %s18, 1
    %p36 = por %p34, %p35
    %p37 = scmp.ne.s32.totalorder %s26, %s27
    %p38 = scmp.eq.s32.totalorder %s18, 0
    %p39 = por %p37, %p38
    %p40 = scmp.ne.s32.totalorder %s26, %s27
    %p41 = scmp.eq.s32.totalorder %s19, 1
    %p42 = por %p40, %p41
    %p44 = scmp.ne.s32.totalorder %s27, %s43
    %p45 = scmp.eq.s32.totalorder %s19, 0
    %p46 = por %p44, %p45
    %s48 = sadd.s32 %s47, 1
    %p51 = scmp.eq.s32.totalorder %s13, 1
    %p52 = scmp.ne.s32.totalorder %s47, %s49
    %p53 = scmp.eq.s32.totalorder %s13, 0
    %p54 = por %p52, %p53
    %p55 = scmp.ne.s32.totalorder %s47, %s49
    %p56 = scmp.eq.s32.totalorder %s18, 1
    %p57 = por %p55, %p56
    %p58 = scmp.ne.s32.totalorder %s49, %s50
    %p59 = scmp.eq.s32.totalorder %s18, 0
    %p60 = por %p58, %p59
    %p61 = scmp.ne.s32.totalorder %s49, %s50
    %p62 = scmp.eq.s32.totalorder %s19, 1
    %p63 = por %p61, %p62
    %p65 = scmp.ne.s32.totalorder %s50, %s64
    %p66 = scmp.eq.s32.totalorder %s19, 0
    %p67 = por %p65, %p66
    %s69 = sadd.s32 %s68, 1
    %p72 = scmp.eq.s32.totalorder %s13, 1
    %p73 = scmp.ne.s32.totalorder %s68, %s70
    %p74 = scmp.eq.s32.totalorder %s13, 0
    %p75 = por %p73, %p74
    %p76 = scmp.ne.s32.totalorder %s68, %s70
    %p77 = scmp.eq.s32.totalorder %s18, 1
    %p78 = por %p76, %p77
    %p79 = scmp.ne.s32.totalorder %s70, %s71
    %p80 = scmp.eq.s32.totalorder %s18, 0
    %p81 = por %p79, %p80
    %p82 = scmp.ne.s32.totalorder %s70, %s71
    %p83 = scmp.eq.s32.totalorder %s19, 1
    %p84 = por %p82, %p83
    %p86 = scmp.ne.s32.totalorder %s71, %s85
    %p87 = scmp.eq.s32.totalorder %s19, 0
    %p88 = por %p86, %p87
    %s90 = sadd.s32 %s89, 1
    %p93 = scmp.eq.s32.totalorder %s13, 1
    %p94 = scmp.ne.s32.totalorder %s89, %s91
    %p95 = scmp.eq.s32.totalorder %s13, 0
    %p96 = por %p94, %p95
    %p97 = scmp.ne.s32.totalorder %s89, %s91
    %p98 = scmp.eq.s32.totalorder %s18, 1
    %p99 = por %p97, %p98
    %p100 = scmp.ne.s32.totalorder %s91, %s92
    %p101 = scmp.eq.s32.totalorder %s18, 0
    %p102 = por %p100, %p101
    %p103 = scmp.ne.s32.totalorder %s91, %s92
    %p104 = scmp.eq.s32.totalorder %s19, 1
    %p105 = por %p103, %p104
    %p107 = scmp.ne.s32.totalorder %s92, %s106
    %p108 = scmp.eq.s32.totalorder %s19, 0
    %p109 = por %p107, %p108
    %s111 = sadd.s32 %s110, 1
    %p114 = scmp.eq.s32.totalorder %s13, 1
    %p115 = scmp.ne.s32.totalorder %s110, %s112
    %p116 = scmp.eq.s32.totalorder %s13, 0
    %p117 = por %p115, %p116
    %p118 = scmp.ne.s32.totalorder %s110, %s112
    %p119 = scmp.eq.s32.totalorder %s18, 1
    %p120 = por %p118, %p119
    %p121 = scmp.ne.s32.totalorder %s112, %s113
    %p122 = scmp.eq.s32.totalorder %s18, 0
    %p123 = por %p121, %p122
    %p124 = scmp.ne.s32.totalorder %s112, %s113
    %p125 = scmp.eq.s32.totalorder %s19, 1
    %p126 = por %p124, %p125
    %p128 = scmp.ne.s32.totalorder %s113, %s127
    %p129 = scmp.eq.s32.totalorder %s19, 0
    %p130 = por %p128, %p129
    %s132 = sadd.s32 %s131, 1
    %p135 = scmp.eq.s32.totalorder %s13, 1
    %p136 = scmp.ne.s32.totalorder %s131, %s133
    %p137 = scmp.eq.s32.totalorder %s13, 0
    %p138 = por %p136, %p137
    %p139 = scmp.ne.s32.totalorder %s131, %s133
    %p140 = scmp.eq.s32.totalorder %s18, 1
    %p141 = por %p139, %p140
    %p142 = scmp.ne.s32.totalorder %s133, %s134
    %p143 = scmp.eq.s32.totalorder %s18, 0
    %p144 = por %p142, %p143
    %p145 = scmp.ne.s32.totalorder %s133, %s134
    %p146 = scmp.eq.s32.totalorder %s19, 1
    %p147 = por %p145, %p146
    %p149 = scmp.ne.s32.totalorder %s134, %s148
    %p150 = scmp.eq.s32.totalorder %s19, 0
    %p151 = por %p149, %p150
    %s153 = sadd.s32 %s152, 1
    %p156 = scmp.eq.s32.totalorder %s13, 1
    %p157 = scmp.ne.s32.totalorder %s152, %s154
    %p158 = scmp.eq.s32.totalorder %s13, 0
    %p159 = por %p157, %p158
    %p160 = scmp.ne.s32.totalorder %s152, %s154
    %p161 = scmp.eq.s32.totalorder %s18, 1
    %p162 = por %p160, %p161
    %p163 = scmp.ne.s32.totalorder %s154, %s155
    %p164 = scmp.eq.s32.totalorder %s18, 0
    %p165 = por %p163, %p164
    %p166 = scmp.ne.s32.totalorder %s154, %s155
    %p167 = scmp.eq.s32.totalorder %s19, 1
    %p168 = por %p166, %p167
    %p170 = scmp.ne.s32.totalorder %s155, %s169
    %p171 = scmp.eq.s32.totalorder %s19, 0
    %p172 = por %p170, %p171
    %s173 = ssub.s32 %s13, %s20
    %p174 = scmp.eq.s32.totalorder %s173, 0
    %s176 = sadd.s32 %s175, 1
    %s177 = scalar_select %p174, %s175, %s176
    %p180 = pneg %p174
    %p181 = scmp.eq.s32.totalorder %s13, 1
    %p182 = por %p180, %p181
    %p183 = scmp.ne.s32.totalorder %s175, %s178
    %p184 = scmp.eq.s32.totalorder %s13, 0
    %p185 = por %p183, %p184
    %p186 = scmp.ne.s32.totalorder %s175, %s178
    %p187 = scmp.eq.s32.totalorder %s18, 1
    %p188 = por %p186, %p187
    %p189 = scmp.ne.s32.totalorder %s178, %s179
    %p190 = scmp.eq.s32.totalorder %s18, 0
    %p191 = por %p189, %p190
    %p192 = scmp.ne.s32.totalorder %s178, %s179
    %p193 = scmp.eq.s32.totalorder %s19, 1
    %p194 = por %p192, %p193
    %p196 = scmp.ne.s32.totalorder %s179, %s195
    %p197 = scmp.eq.s32.totalorder %s19, 0
    %p198 = por %p196, %p197
    %p199 = scmp.le.s32.totalorder 1, %s13
    %p200 = scmp.lt.s32.totalorder %s13, 3
    %p201 = pnand %p199, %p200
    %p202 = pneg %p201
    // Predicated region
    $region9: #{neural_net_forward.1} parent=5 // pred_check
      _
    $region10: #{neural_net_forward.1} parent=5 // pred_check_branch
      %204 = sbr.rel (%p201) target = $region12
    $region11: #{neural_net_forward.1} parent=5 // pred_region
      %s205 = ssub.s32 %s13, 1
      // Predicated region
      $region13: #{neural_net_forward.1} parent=11 // pred_check
        %p206 = pneg %p60
      $region14: #{neural_net_forward.1} parent=11 // pred_check_branch
        %208 = sbr.rel (%p206) target = $region16
      $region15: #{neural_net_forward.1} parent=11 // pred_region
        _
      $region16: #{neural_net_forward.1} parent=11 // pred_fallthru
        _
      // Predicated region
      $region17: #{neural_net_forward.1} parent=11 // pred_check
        %p209 = pneg %p81
      $region18: #{neural_net_forward.1} parent=11 // pred_check_branch
        %211 = sbr.rel (%p209) target = $region20
      $region19: #{neural_net_forward.1} parent=11 // pred_region
        _
      $region20: #{neural_net_forward.1} parent=11 // pred_fallthru
        _
      // Predicated region
      $region21: #{neural_net_forward.1} parent=11 // pred_check
        %p212 = pneg %p102
      $region22: #{neural_net_forward.1} parent=11 // pred_check_branch
        %214 = sbr.rel (%p212) target = $region24
      $region23: #{neural_net_forward.1} parent=11 // pred_region
        _
      $region24: #{neural_net_forward.1} parent=11 // pred_fallthru
        _
      // Predicated region
      $region25: #{neural_net_forward.1} parent=11 // pred_check
        %p215 = pneg %p123
      $region26: #{neural_net_forward.1} parent=11 // pred_check_branch
        %217 = sbr.rel (%p215) target = $region28
      $region27: #{neural_net_forward.1} parent=11 // pred_region
        _
      $region28: #{neural_net_forward.1} parent=11 // pred_fallthru
        _
      // Predicated region
      $region29: #{neural_net_forward.1} parent=11 // pred_check
        %p218 = pneg %p144
      $region30: #{neural_net_forward.1} parent=11 // pred_check_branch
        %220 = sbr.rel (%p218) target = $region32
      $region31: #{neural_net_forward.1} parent=11 // pred_region
        _
      $region32: #{neural_net_forward.1} parent=11 // pred_fallthru
        _
      // Predicated region
      $region33: #{neural_net_forward.1} parent=11 // pred_check
        %p221 = pneg %p165
      $region34: #{neural_net_forward.1} parent=11 // pred_check_branch
        %223 = sbr.rel (%p221) target = $region36
      $region35: #{neural_net_forward.1} parent=11 // pred_region
        _
      $region36: #{neural_net_forward.1} parent=11 // pred_fallthru
        _
    $region12: #{neural_net_forward.1} parent=5 // pred_fallthru
      _
    %p224 = scmp.lt.s32.totalorder %s13, 2
    // Predicated region
    $region37: #{neural_net_forward.1} parent=5 // pred_check
      %p225 = pneg %p224
    $region38: #{neural_net_forward.1} parent=5 // pred_check_branch
      %227 = sbr.rel (%p225) target = $region40
    $region39: #{neural_net_forward.1} parent=5 // pred_region
      // Predicated region
      $region41: #{neural_net_forward.1} parent=39 // pred_check
        %p228 = pneg %p33
      $region42: #{neural_net_forward.1} parent=39 // pred_check_branch
        %230 = sbr.rel (%p228) target = $region44
      $region43: #{neural_net_forward.1} parent=39 // pred_region
        %s231 = smul.u32 16, %s13
        %p232 = scmp.lt.s32.totalorder %s231, 31
        %s233 = scalar_select %p232, %s231, 31
        %s234 = smul.addr %s233, 7
        %s235 = smul.addr %s234, 4
        %s236 = scalar_lea.vmem %s0, %s235
        %s237 = smul.u32 16, %s13
      $region44: #{neural_net_forward.1} parent=39 // pred_fallthru
        _
    $region40: #{neural_net_forward.1} parent=5 // pred_fallthru
      _
    %p238 = scmp.le.s32.totalorder 1, %s13
    %p239 = scmp.lt.s32.totalorder %s13, 3
    %p240 = pnand %p238, %p239
    %p241 = pneg %p240
    // Predicated region
    $region45: #{neural_net_forward.1} parent=5 // pred_check
      _
    $region46: #{neural_net_forward.1} parent=5 // pred_check_branch
      %243 = sbr.rel (%p240) target = $region48
    $region47: #{neural_net_forward.1} parent=5 // pred_region
      %s244 = ssub.s32 %s13, 1
      %s245 = smul.u32 16, %s18
      %p246 = scmp.lt.s32.totalorder %s245, 31
      %s247 = scalar_select %p246, %s245, 31
      %s248 = smul.addr %s247, 7
      %s249 = smul.addr %s248, 4
      %s250 = scalar_lea.vmem %s0, %s249
      %p251 = pneg %p39
      %p252 = pneg %p36
      %p253 = pneg %p60
      %p254 = pneg %p57
      %p255 = pneg %p81
      %p256 = pneg %p78
      %p257 = pneg %p102
      %p258 = pneg %p99
      %p259 = pneg %p123
      %p260 = pneg %p120
      %p261 = pneg %p144
      %p262 = pneg %p141
      %p263 = pneg %p165
      %p264 = pneg %p162
      %p265 = pneg %p191
      %p266 = pneg %p188
      %s267 = smul.u32 16, %s18
      %p268 = scmp.lt.s32.totalorder %s267, 31
      %s269 = scalar_select %p268, %s267, 31
      %s270 = smul.addr %s269, 8
      %s271 = scalar_lea.vmem %s7, %s270
      %s272 = smul.u32 16, %s18
      %p273 = scmp.lt.s32.totalorder %s272, 31
      %s274 = scalar_select %p273, %s272, 31
      %s275 = smul.addr %s274, 7
      %s276 = smul.addr %s275, 4
      %s277 = scalar_lea.vmem %s0, %s276
      %s278 = smul.u32 16, %s18
      %s279 = smul.u32 16, %s18
      %p280 = scmp.lt.s32.totalorder %s279, 31
      %s281 = scalar_select %p280, %s279, 31
      %s282 = smul.addr %s281, 8
      %s283 = scalar_lea.vmem %s7, %s282
      %s284 = smul.u32 16, %s18
      %v286 = vld [vmem:[%s277] sm:$0xff]
      %v287 = vld [vmem:[%s277 + $0x8] sm:$0xff]
      %v288 = vld [vmem:[%s277 + $0x10] sm:$0xff]
      %v289 = vld [vmem:[%s277 + $0x18] sm:$0xf]
      %v290 = vld [vmem:[%s277 + $0x1c] sm:$0xff]
      %v291 = vld [vmem:[%s277 + $0x24] sm:$0xff]
      %v292 = vld [vmem:[%s277 + $0x2c] sm:$0xff]
      %v293 = vld [vmem:[%s277 + $0x34] sm:$0xf]
      %v294 = vld [vmem:[%s277 + $0x38] sm:$0xff]
      %v295 = vld [vmem:[%s277 + $0x40] sm:$0xff]
      %v296 = vld [vmem:[%s277 + $0x48] sm:$0xff]
      %v297 = vld [vmem:[%s277 + $0x50] sm:$0xf]
      %v298 = vld [vmem:[%s277 + $0x54] sm:$0xff]
      %v299 = vld [vmem:[%s277 + $0x5c] sm:$0xff]
      %v300 = vld [vmem:[%s277 + $0x64] sm:$0xff]
      %v301 = vld [vmem:[%s277 + $0x6c] sm:$0xf]
      %v302 = vld [vmem:[%s277 + $0x70] sm:$0xff]
      %v303 = vld [vmem:[%s277 + $0x78] sm:$0xff]
      %v304 = vld [vmem:[%s277 + $0x80] sm:$0xff]
      %v305 = vld [vmem:[%s277 + $0x88] sm:$0xf]
      %v306 = vld [vmem:[%s277 + $0x8c] sm:$0xff]
      %v307 = vld [vmem:[%s277 + $0x94] sm:$0xff]
      %v308 = vld [vmem:[%s277 + $0x9c] sm:$0xff]
      %v309 = vld [vmem:[%s277 + $0xa4] sm:$0xf]
      %v310 = vld [vmem:[%s277 + $0xa8] sm:$0xff]
      %v311 = vld [vmem:[%s277 + $0xb0] sm:$0xff]
      %v312 = vld [vmem:[%s277 + $0xb8] sm:$0xff]
      %v313 = vld [vmem:[%s277 + $0xc0] sm:$0xf]
      %v314 = vld [vmem:[%s277 + $0xc4] sm:$0xff]
      %v315 = vld [vmem:[%s277 + $0xcc] sm:$0xff]
      %v316 = vld [vmem:[%s277 + $0xd4] sm:$0xff]
      %v317 = vld [vmem:[%s277 + $0xdc] sm:$0xf]
      %v318 = vld [vmem:[%s277 + $0xe0] sm:$0xff]
      %v319 = vld [vmem:[%s277 + $0xe8] sm:$0xff]
      %v320 = vld [vmem:[%s277 + $0xf0] sm:$0xff]
      %v321 = vld [vmem:[%s277 + $0xf8] sm:$0xf]
      %v322 = vld [vmem:[%s277 + $0xfc] sm:$0xff]
      %v323 = vld [vmem:[%s277 + $0x104] sm:$0xff]
      %v324 = vld [vmem:[%s277 + $0x10c] sm:$0xff]
      %v325 = vld [vmem:[%s277 + $0x114] sm:$0xf]
      %v326 = vld [vmem:[%s277 + $0x118] sm:$0xff]
      %v327 = vld [vmem:[%s277 + $0x120] sm:$0xff]
      %v328 = vld [vmem:[%s277 + $0x128] sm:$0xff]
      %v329 = vld [vmem:[%s277 + $0x130] sm:$0xf]
      %v330 = vld [vmem:[%s277 + $0x134] sm:$0xff]
      %v331 = vld [vmem:[%s277 + $0x13c] sm:$0xff]
      %v332 = vld [vmem:[%s277 + $0x144] sm:$0xff]
      %v333 = vld [vmem:[%s277 + $0x14c] sm:$0xf]
      %v334 = vld [vmem:[%s277 + $0x150] sm:$0xff]
      %v335 = vld [vmem:[%s277 + $0x158] sm:$0xff]
      %v336 = vld [vmem:[%s277 + $0x160] sm:$0xff]
      %v337 = vld [vmem:[%s277 + $0x168] sm:$0xf]
      %v338 = vld [vmem:[%s277 + $0x16c] sm:$0xff]
      %v339 = vld [vmem:[%s277 + $0x174] sm:$0xff]
      %v340 = vld [vmem:[%s277 + $0x17c] sm:$0xff]
      %v341 = vld [vmem:[%s277 + $0x184] sm:$0xf]
      %v342 = vld [vmem:[%s277 + $0x188] sm:$0xff]
      %v343 = vld [vmem:[%s277 + $0x190] sm:$0xff]
      %v344 = vld [vmem:[%s277 + $0x198] sm:$0xff]
      %v345 = vld [vmem:[%s277 + $0x1a0] sm:$0xf]
      %v346 = vld [vmem:[%s277 + $0x1a4] sm:$0xff]
      %v347 = vld [vmem:[%s277 + $0x1ac] sm:$0xff]
      %v348 = vld [vmem:[%s277 + $0x1b4] sm:$0xff]
      %v349 = vld [vmem:[%s277 + $0x1bc] sm:$0xf]
      %v350 = vld [vmem:[%s1] sm:$0xf]
      %v351 = vld [vmem:[%s1 + $0x4] sm:$0xf]
      %v352 = vld [vmem:[%s1 + $0x8] sm:$0xf]
      %v353 = vld [vmem:[%s1 + $0xc] sm:$0xf]
      %v354 = vld [vmem:[%s1 + $0x10] sm:$0xf]
      %v355 = vld [vmem:[%s1 + $0x14] sm:$0xf]
      %v356 = vld [vmem:[%s1 + $0x18] sm:$0xf]
      %v357 = vld [vmem:[%s1 + $0x1c] sm:$0xf]
      %v358 = vld [vmem:[%s1 + $0x20] sm:$0xf]
      %v359 = vld [vmem:[%s1 + $0x24] sm:$0xf]
      %v360 = vld [vmem:[%s1 + $0x28] sm:$0xf]
      %v361 = vld [vmem:[%s1 + $0x2c] sm:$0xf]
      %v362 = vld [vmem:[%s1 + $0x30] sm:$0xf]
      %v363 = vld [vmem:[%s1 + $0x34] sm:$0xf]
      %v364 = vld [vmem:[%s1 + $0x38] sm:$0xf]
      %v365 = vld [vmem:[%s1 + $0x3c] sm:$0xf]
      %v366 = vld [vmem:[%s1 + $0x40] sm:$0xf]
      %v367 = vld [vmem:[%s1 + $0x44] sm:$0xf]
      %v368 = vld [vmem:[%s1 + $0x48] sm:$0xf]
      %v369 = vld [vmem:[%s1 + $0x4c] sm:$0xf]
      %v370 = vld [vmem:[%s1 + $0x50] sm:$0xf]
      %v371 = vld [vmem:[%s1 + $0x54] sm:$0xf]
      %v372 = vld [vmem:[%s1 + $0x58] sm:$0xf]
      %v373 = vld [vmem:[%s1 + $0x5c] sm:$0xf]
      %v374 = vld [vmem:[%s1 + $0x60] sm:$0xf]
      %v375 = vld [vmem:[%s1 + $0x64] sm:$0xf]
      %v376 = vld [vmem:[%s1 + $0x68] sm:$0xf]
      %v377 = vld [vmem:[%s1 + $0x6c] sm:$0xf]
      %v378 = vld [vmem:[%s1 + $0x70] sm:$0xf]
      %v379 = vld [vmem:[%s1 + $0x74] sm:$0xf]
      %v380 = vld [vmem:[%s1 + $0x78] sm:$0xf]
      %v381 = vld [vmem:[%s1 + $0x7c] sm:$0xf]
      %v382 = vld [vmem:[%s1 + $0x80] sm:$0xf]
      %v383 = vld [vmem:[%s1 + $0x84] sm:$0xf]
      %v384 = vld [vmem:[%s1 + $0x88] sm:$0xf]
      %v385 = vld [vmem:[%s1 + $0x8c] sm:$0xf]
      %v386 = vld [vmem:[%s1 + $0x90] sm:$0xf]
      %v387 = vld [vmem:[%s1 + $0x94] sm:$0xf]
      %v388 = vld [vmem:[%s1 + $0x98] sm:$0xf]
      %v389 = vld [vmem:[%s1 + $0x9c] sm:$0xf]
      %v390 = vld [vmem:[%s1 + $0xa0] sm:$0xf]
      %v391 = vld [vmem:[%s1 + $0xa4] sm:$0xf]
      %v392 = vld [vmem:[%s1 + $0xa8] sm:$0xf]
      %v393 = vld [vmem:[%s1 + $0xac] sm:$0xf]
      %v394 = vld [vmem:[%s1 + $0xb0] sm:$0xf]
      %v395 = vld [vmem:[%s1 + $0xb4] sm:$0xf]
      %v396 = vld [vmem:[%s1 + $0xb8] sm:$0xf]
      %v397 = vld [vmem:[%s1 + $0xbc] sm:$0xf]
      %v398 = vld [vmem:[%s1 + $0xc0] sm:$0xf]
      %v399 = vld [vmem:[%s1 + $0xc4] sm:$0xf]
      %v400 = vld [vmem:[%s1 + $0xc8] sm:$0xf]
      %v401 = vld [vmem:[%s1 + $0xcc] sm:$0xf]
      %v402 = vld [vmem:[%s1 + $0xd0] sm:$0xf]
      %v403 = vld [vmem:[%s1 + $0xd4] sm:$0xf]
      %v404 = vld [vmem:[%s1 + $0xd8] sm:$0xf]
      %v405 = vld [vmem:[%s1 + $0xdc] sm:$0xf]
      %v406 = vld [vmem:[%s1 + $0xe0] sm:$0xf]
      %v407 = vld [vmem:[%s1 + $0xe4] sm:$0xf]
      %v408 = vld [vmem:[%s1 + $0xe8] sm:$0xf]
      %v409 = vld [vmem:[%s1 + $0xec] sm:$0xf]
      %v410 = vld [vmem:[%s1 + $0xf0] sm:$0xf]
      %v411 = vld [vmem:[%s1 + $0xf4] sm:$0xf]
      %v412 = vld [vmem:[%s1 + $0xf8] sm:$0xf]
      %v413 = vld [vmem:[%s1 + $0xfc] sm:$0xf]
      %v414 = vld [vmem:[%s1 + $0x100] sm:$0xf]
      %v415 = vld [vmem:[%s1 + $0x104] sm:$0xf]
      %v416 = vld [vmem:[%s1 + $0x108] sm:$0xf]
      %v417 = vld [vmem:[%s1 + $0x10c] sm:$0xf]
      %v418 = vld [vmem:[%s1 + $0x110] sm:$0xf]
      %v419 = vld [vmem:[%s1 + $0x114] sm:$0xf]
      %v420 = vld [vmem:[%s1 + $0x118] sm:$0xf]
      %v421 = vld [vmem:[%s1 + $0x11c] sm:$0xf]
      %v422 = vld [vmem:[%s1 + $0x120] sm:$0xf]
      %v423 = vld [vmem:[%s1 + $0x124] sm:$0xf]
      %v424 = vld [vmem:[%s1 + $0x128] sm:$0xf]
      %v425 = vld [vmem:[%s1 + $0x12c] sm:$0xf]
      %v426 = vld [vmem:[%s1 + $0x130] sm:$0xf]
      %v427 = vld [vmem:[%s1 + $0x134] sm:$0xf]
      %v428 = vld [vmem:[%s1 + $0x138] sm:$0xf]
      %v429 = vld [vmem:[%s1 + $0x13c] sm:$0xf]
      %v430 = vld [vmem:[%s1 + $0x140] sm:$0xf]
      %v431 = vld [vmem:[%s1 + $0x144] sm:$0xf]
      %v432 = vld [vmem:[%s1 + $0x148] sm:$0xf]
      %v433 = vld [vmem:[%s1 + $0x14c] sm:$0xf]
      %v434 = vld [vmem:[%s1 + $0x150] sm:$0xf]
      %v435 = vld [vmem:[%s1 + $0x154] sm:$0xf]
      %v436 = vld [vmem:[%s1 + $0x158] sm:$0xf]
      %v437 = vld [vmem:[%s1 + $0x15c] sm:$0xf]
      %v438 = vld [vmem:[%s1 + $0x160] sm:$0xf]
      %v439 = vld [vmem:[%s1 + $0x164] sm:$0xf]
      %v440 = vld [vmem:[%s1 + $0x168] sm:$0xf]
      %v441 = vld [vmem:[%s1 + $0x16c] sm:$0xf]
      %v442 = vld [vmem:[%s1 + $0x170] sm:$0xf]
      %v443 = vld [vmem:[%s1 + $0x174] sm:$0xf]
      %v444 = vld [vmem:[%s1 + $0x178] sm:$0xf]
      %v445 = vld [vmem:[%s1 + $0x17c] sm:$0xf]
      %v446 = vld [vmem:[%s1 + $0x180] sm:$0xf]
      %v447 = vld [vmem:[%s1 + $0x184] sm:$0xf]
      %v448 = vld [vmem:[%s1 + $0x188] sm:$0xf]
      %v449 = vld [vmem:[%s1 + $0x18c] sm:$0xf]
      %v450 = vld [vmem:[%s1 + $0x190] sm:$0xf]
      %v451 = vld [vmem:[%s1 + $0x194] sm:$0xf]
      %v452 = vld [vmem:[%s1 + $0x198] sm:$0xf]
      %v453 = vld [vmem:[%s1 + $0x19c] sm:$0xf]
      %v454 = vld [vmem:[%s1 + $0x1a0] sm:$0xf]
      %v455 = vld [vmem:[%s1 + $0x1a4] sm:$0xf]
      %v456 = vld [vmem:[%s1 + $0x1a8] sm:$0xf]
      %v457 = vld [vmem:[%s1 + $0x1ac] sm:$0xf]
      %v458 = vld [vmem:[%s1 + $0x1b0] sm:$0xf]
      %v459 = vld [vmem:[%s1 + $0x1b4] sm:$0xf]
      %v460 = vld [vmem:[%s1 + $0x1b8] sm:$0xf]
      %v461 = vld [vmem:[%s1 + $0x1bc] sm:$0xf]
      %v462 = vld [vmem:[%s2] sm:$0x1]
      %v464 = vlaneseq
      %v465 = vshrl.u32 %v464, 7
      %v466 = vsub.s32 0, %v465
      %v467 = vrot.slane %v462, %v466
      %v533 = vunpack.c.l.b16 %v286
      %v534 = vunpack.c.h.b16 %v286
      %v535 = vunpack.c.l.b16 %v287
      %v536 = vunpack.c.h.b16 %v287
      %v537 = vunpack.c.l.b16 %v288
      %v538 = vunpack.c.h.b16 %v288
      %v539 = vunpack.c.l.b16 %v289
      %v540 = vunpack.c.l.b16 %v290
      %v541 = vunpack.c.h.b16 %v290
      %v542 = vunpack.c.l.b16 %v291
      %v543 = vunpack.c.h.b16 %v291
      %v544 = vunpack.c.l.b16 %v292
      %v545 = vunpack.c.h.b16 %v292
      %v546 = vunpack.c.l.b16 %v293
      %v547 = vunpack.c.l.b16 %v294
      %v548 = vunpack.c.h.b16 %v294
      %v549 = vunpack.c.l.b16 %v295
      %v550 = vunpack.c.h.b16 %v295
      %v551 = vunpack.c.l.b16 %v296
      %v552 = vunpack.c.h.b16 %v296
      %v553 = vunpack.c.l.b16 %v297
      %v554 = vunpack.c.l.b16 %v298
      %v555 = vunpack.c.h.b16 %v298
      %v556 = vunpack.c.l.b16 %v299
      %v557 = vunpack.c.h.b16 %v299
      %v558 = vunpack.c.l.b16 %v300
      %v559 = vunpack.c.h.b16 %v300
      %v560 = vunpack.c.l.b16 %v301
      %v561 = vunpack.c.l.b16 %v302
      %v562 = vunpack.c.h.b16 %v302
      %v563 = vunpack.c.l.b16 %v303
      %v564 = vunpack.c.h.b16 %v303
      %v565 = vunpack.c.l.b16 %v304
      %v566 = vunpack.c.h.b16 %v304
      %v567 = vunpack.c.l.b16 %v305
      %v568 = vunpack.c.l.b16 %v306
      %v569 = vunpack.c.h.b16 %v306
      %v570 = vunpack.c.l.b16 %v307
      %v571 = vunpack.c.h.b16 %v307
      %v572 = vunpack.c.l.b16 %v308
      %v573 = vunpack.c.h.b16 %v308
      %v574 = vunpack.c.l.b16 %v309
      %v575 = vunpack.c.l.b16 %v310
      %v576 = vunpack.c.h.b16 %v310
      %v577 = vunpack.c.l.b16 %v311
      %v578 = vunpack.c.h.b16 %v311
      %v579 = vunpack.c.l.b16 %v312
      %v580 = vunpack.c.h.b16 %v312
      %v581 = vunpack.c.l.b16 %v313
      %v582 = vunpack.c.l.b16 %v314
      %v583 = vunpack.c.h.b16 %v314
      %v584 = vunpack.c.l.b16 %v315
      %v585 = vunpack.c.h.b16 %v315
      %v586 = vunpack.c.l.b16 %v316
      %v587 = vunpack.c.h.b16 %v316
      %v588 = vunpack.c.l.b16 %v317
      %v589 = vunpack.c.l.b16 %v318
      %v590 = vunpack.c.h.b16 %v318
      %v591 = vunpack.c.l.b16 %v319
      %v592 = vunpack.c.h.b16 %v319
      %v593 = vunpack.c.l.b16 %v320
      %v594 = vunpack.c.h.b16 %v320
      %v595 = vunpack.c.l.b16 %v321
      %v596 = vunpack.c.l.b16 %v322
      %v597 = vunpack.c.h.b16 %v322
      %v598 = vunpack.c.l.b16 %v323
      %v599 = vunpack.c.h.b16 %v323
      %v600 = vunpack.c.l.b16 %v324
      %v601 = vunpack.c.h.b16 %v324
      %v602 = vunpack.c.l.b16 %v325
      %v603 = vunpack.c.l.b16 %v326
      %v604 = vunpack.c.h.b16 %v326
      %v605 = vunpack.c.l.b16 %v327
      %v606 = vunpack.c.h.b16 %v327
      %v607 = vunpack.c.l.b16 %v328
      %v608 = vunpack.c.h.b16 %v328
      %v609 = vunpack.c.l.b16 %v329
      %v610 = vunpack.c.l.b16 %v330
      %v611 = vunpack.c.h.b16 %v330
      %v612 = vunpack.c.l.b16 %v331
      %v613 = vunpack.c.h.b16 %v331
      %v614 = vunpack.c.l.b16 %v332
      %v615 = vunpack.c.h.b16 %v332
      %v616 = vunpack.c.l.b16 %v333
      %v617 = vunpack.c.l.b16 %v334
      %v618 = vunpack.c.h.b16 %v334
      %v619 = vunpack.c.l.b16 %v335
      %v620 = vunpack.c.h.b16 %v335
      %v621 = vunpack.c.l.b16 %v336
      %v622 = vunpack.c.h.b16 %v336
      %v623 = vunpack.c.l.b16 %v337
      %v624 = vunpack.c.l.b16 %v338
      %v625 = vunpack.c.h.b16 %v338
      %v626 = vunpack.c.l.b16 %v339
      %v627 = vunpack.c.h.b16 %v339
      %v628 = vunpack.c.l.b16 %v340
      %v629 = vunpack.c.h.b16 %v340
      %v630 = vunpack.c.l.b16 %v341
      %v631 = vunpack.c.l.b16 %v342
      %v632 = vunpack.c.h.b16 %v342
      %v633 = vunpack.c.l.b16 %v343
      %v634 = vunpack.c.h.b16 %v343
      %v635 = vunpack.c.l.b16 %v344
      %v636 = vunpack.c.h.b16 %v344
      %v637 = vunpack.c.l.b16 %v345
      %v638 = vunpack.c.l.b16 %v346
      %v639 = vunpack.c.h.b16 %v346
      %v640 = vunpack.c.l.b16 %v347
      %v641 = vunpack.c.h.b16 %v347
      %v642 = vunpack.c.l.b16 %v348
      %v643 = vunpack.c.h.b16 %v348
      %v644 = vunpack.c.l.b16 %v349
      %v645 = vpack.c.b16 %v540, %v533
      %v646 = vpack.c.b16 %v541, %v534
      %v647 = vpack.c.b16 %v542, %v535
      %v648 = vpack.c.b16 %v543, %v536
      %v649 = vpack.c.b16 %v544, %v537
      %v650 = vpack.c.b16 %v545, %v538
      %v651 = vpack.c.b16 %v546, %v539
      %v652 = vpack.c.b16 %v554, %v547
      %v653 = vpack.c.b16 %v555, %v548
      %v654 = vpack.c.b16 %v556, %v549
      %v655 = vpack.c.b16 %v557, %v550
      %v656 = vpack.c.b16 %v558, %v551
      %v657 = vpack.c.b16 %v559, %v552
      %v658 = vpack.c.b16 %v560, %v553
      %v659 = vpack.c.b16 %v568, %v561
      %v660 = vpack.c.b16 %v569, %v562
      %v661 = vpack.c.b16 %v570, %v563
      %v662 = vpack.c.b16 %v571, %v564
      %v663 = vpack.c.b16 %v572, %v565
      %v664 = vpack.c.b16 %v573, %v566
      %v665 = vpack.c.b16 %v574, %v567
      %v666 = vpack.c.b16 %v582, %v575
      %v667 = vpack.c.b16 %v583, %v576
      %v668 = vpack.c.b16 %v584, %v577
      %v669 = vpack.c.b16 %v585, %v578
      %v670 = vpack.c.b16 %v586, %v579
      %v671 = vpack.c.b16 %v587, %v580
      %v672 = vpack.c.b16 %v588, %v581
      %v673 = vpack.c.b16 %v596, %v589
      %v674 = vpack.c.b16 %v597, %v590
      %v675 = vpack.c.b16 %v598, %v591
      %v676 = vpack.c.b16 %v599, %v592
      %v677 = vpack.c.b16 %v600, %v593
      %v678 = vpack.c.b16 %v601, %v594
      %v679 = vpack.c.b16 %v602, %v595
      %v680 = vpack.c.b16 %v610, %v603
      %v681 = vpack.c.b16 %v611, %v604
      %v682 = vpack.c.b16 %v612, %v605
      %v683 = vpack.c.b16 %v613, %v606
      %v684 = vpack.c.b16 %v614, %v607
      %v685 = vpack.c.b16 %v615, %v608
      %v686 = vpack.c.b16 %v616, %v609
      %v687 = vpack.c.b16 %v624, %v617
      %v688 = vpack.c.b16 %v625, %v618
      %v689 = vpack.c.b16 %v626, %v619
      %v690 = vpack.c.b16 %v627, %v620
      %v691 = vpack.c.b16 %v628, %v621
      %v692 = vpack.c.b16 %v629, %v622
      %v693 = vpack.c.b16 %v630, %v623
      %v694 = vpack.c.b16 %v638, %v631
      %v695 = vpack.c.b16 %v639, %v632
      %v696 = vpack.c.b16 %v640, %v633
      %v697 = vpack.c.b16 %v641, %v634
      %v698 = vpack.c.b16 %v642, %v635
      %v699 = vpack.c.b16 %v643, %v636
      %v700 = vpack.c.b16 %v644, %v637
      %v869 = vunpack.c.l.b16 %v350
      %v870 = vunpack.c.l.b16 %v351
      %v871 = vunpack.c.l.b16 %v352
      %v872 = vunpack.c.l.b16 %v353
      %v873 = vunpack.c.l.b16 %v354
      %v874 = vunpack.c.l.b16 %v355
      %v875 = vunpack.c.l.b16 %v356
      %v876 = vunpack.c.l.b16 %v357
      %v877 = vunpack.c.l.b16 %v358
      %v878 = vunpack.c.l.b16 %v359
      %v879 = vunpack.c.l.b16 %v360
      %v880 = vunpack.c.l.b16 %v361
      %v881 = vunpack.c.l.b16 %v362
      %v882 = vunpack.c.l.b16 %v363
      %v883 = vunpack.c.l.b16 %v364
      %v884 = vunpack.c.l.b16 %v365
      %v885 = vunpack.c.l.b16 %v366
      %v886 = vunpack.c.l.b16 %v367
      %v887 = vunpack.c.l.b16 %v368
      %v888 = vunpack.c.l.b16 %v369
      %v889 = vunpack.c.l.b16 %v370
      %v890 = vunpack.c.l.b16 %v371
      %v891 = vunpack.c.l.b16 %v372
      %v892 = vunpack.c.l.b16 %v373
      %v893 = vunpack.c.l.b16 %v374
      %v894 = vunpack.c.l.b16 %v375
      %v895 = vunpack.c.l.b16 %v376
      %v896 = vunpack.c.l.b16 %v377
      %v897 = vunpack.c.l.b16 %v378
      %v898 = vunpack.c.l.b16 %v379
      %v899 = vunpack.c.l.b16 %v380
      %v900 = vunpack.c.l.b16 %v381
      %v901 = vunpack.c.l.b16 %v382
      %v902 = vunpack.c.l.b16 %v383
      %v903 = vunpack.c.l.b16 %v384
      %v904 = vunpack.c.l.b16 %v385
      %v905 = vunpack.c.l.b16 %v386
      %v906 = vunpack.c.l.b16 %v387
      %v907 = vunpack.c.l.b16 %v388
      %v908 = vunpack.c.l.b16 %v389
      %v909 = vunpack.c.l.b16 %v390
      %v910 = vunpack.c.l.b16 %v391
      %v911 = vunpack.c.l.b16 %v392
      %v912 = vunpack.c.l.b16 %v393
      %v913 = vunpack.c.l.b16 %v394
      %v914 = vunpack.c.l.b16 %v395
      %v915 = vunpack.c.l.b16 %v396
      %v916 = vunpack.c.l.b16 %v397
      %v917 = vunpack.c.l.b16 %v398
      %v918 = vunpack.c.l.b16 %v399
      %v919 = vunpack.c.l.b16 %v400
      %v920 = vunpack.c.l.b16 %v401
      %v921 = vunpack.c.l.b16 %v402
      %v922 = vunpack.c.l.b16 %v403
      %v923 = vunpack.c.l.b16 %v404
      %v924 = vunpack.c.l.b16 %v405
      %v925 = vunpack.c.l.b16 %v406
      %v926 = vunpack.c.l.b16 %v407
      %v927 = vunpack.c.l.b16 %v408
      %v928 = vunpack.c.l.b16 %v409
      %v929 = vunpack.c.l.b16 %v410
      %v930 = vunpack.c.l.b16 %v411
      %v931 = vunpack.c.l.b16 %v412
      %v932 = vunpack.c.l.b16 %v413
      %v933 = vunpack.c.l.b16 %v414
      %v934 = vunpack.c.l.b16 %v415
      %v935 = vunpack.c.l.b16 %v416
      %v936 = vunpack.c.l.b16 %v417
      %v937 = vunpack.c.l.b16 %v418
      %v938 = vunpack.c.l.b16 %v419
      %v939 = vunpack.c.l.b16 %v420
      %v940 = vunpack.c.l.b16 %v421
      %v941 = vunpack.c.l.b16 %v422
      %v942 = vunpack.c.l.b16 %v423
      %v943 = vunpack.c.l.b16 %v424
      %v944 = vunpack.c.l.b16 %v425
      %v945 = vunpack.c.l.b16 %v426
      %v946 = vunpack.c.l.b16 %v427
      %v947 = vunpack.c.l.b16 %v428
      %v948 = vunpack.c.l.b16 %v429
      %v949 = vunpack.c.l.b16 %v430
      %v950 = vunpack.c.l.b16 %v431
      %v951 = vunpack.c.l.b16 %v432
      %v952 = vunpack.c.l.b16 %v433
      %v953 = vunpack.c.l.b16 %v434
      %v954 = vunpack.c.l.b16 %v435
      %v955 = vunpack.c.l.b16 %v436
      %v956 = vunpack.c.l.b16 %v437
      %v957 = vunpack.c.l.b16 %v438
      %v958 = vunpack.c.l.b16 %v439
      %v959 = vunpack.c.l.b16 %v440
      %v960 = vunpack.c.l.b16 %v441
      %v961 = vunpack.c.l.b16 %v442
      %v962 = vunpack.c.l.b16 %v443
      %v963 = vunpack.c.l.b16 %v444
      %v964 = vunpack.c.l.b16 %v445
      %v965 = vunpack.c.l.b16 %v446
      %v966 = vunpack.c.l.b16 %v447
      %v967 = vunpack.c.l.b16 %v448
      %v968 = vunpack.c.l.b16 %v449
      %v969 = vunpack.c.l.b16 %v450
      %v970 = vunpack.c.l.b16 %v451
      %v971 = vunpack.c.l.b16 %v452
      %v972 = vunpack.c.l.b16 %v453
      %v973 = vunpack.c.l.b16 %v454
      %v974 = vunpack.c.l.b16 %v455
      %v975 = vunpack.c.l.b16 %v456
      %v976 = vunpack.c.l.b16 %v457
      %v977 = vunpack.c.l.b16 %v458
      %v978 = vunpack.c.l.b16 %v459
      %v979 = vunpack.c.l.b16 %v460
      %v980 = vunpack.c.l.b16 %v461
      %v981 = vpack.c.b16 %v870, %v869
      %v982 = vpack.c.b16 %v872, %v871
      %v983 = vpack.c.b16 %v874, %v873
      %v984 = vpack.c.b16 %v876, %v875
      %v985 = vpack.c.b16 %v878, %v877
      %v986 = vpack.c.b16 %v880, %v879
      %v987 = vpack.c.b16 %v882, %v881
      %v988 = vpack.c.b16 %v884, %v883
      %v989 = vpack.c.b16 %v886, %v885
      %v990 = vpack.c.b16 %v888, %v887
      %v991 = vpack.c.b16 %v890, %v889
      %v992 = vpack.c.b16 %v892, %v891
      %v993 = vpack.c.b16 %v894, %v893
      %v994 = vpack.c.b16 %v896, %v895
      %v995 = vpack.c.b16 %v898, %v897
      %v996 = vpack.c.b16 %v900, %v899
      %v997 = vpack.c.b16 %v902, %v901
      %v998 = vpack.c.b16 %v904, %v903
      %v999 = vpack.c.b16 %v906, %v905
      %v1000 = vpack.c.b16 %v908, %v907
      %v1001 = vpack.c.b16 %v910, %v909
      %v1002 = vpack.c.b16 %v912, %v911
      %v1003 = vpack.c.b16 %v914, %v913
      %v1004 = vpack.c.b16 %v916, %v915
      %v1005 = vpack.c.b16 %v918, %v917
      %v1006 = vpack.c.b16 %v920, %v919
      %v1007 = vpack.c.b16 %v922, %v921
      %v1008 = vpack.c.b16 %v924, %v923
      %v1009 = vpack.c.b16 %v926, %v925
      %v1010 = vpack.c.b16 %v928, %v927
      %v1011 = vpack.c.b16 %v930, %v929
      %v1012 = vpack.c.b16 %v932, %v931
      %v1013 = vpack.c.b16 %v934, %v933
      %v1014 = vpack.c.b16 %v936, %v935
      %v1015 = vpack.c.b16 %v938, %v937
      %v1016 = vpack.c.b16 %v940, %v939
      %v1017 = vpack.c.b16 %v942, %v941
      %v1018 = vpack.c.b16 %v944, %v943
      %v1019 = vpack.c.b16 %v946, %v945
      %v1020 = vpack.c.b16 %v948, %v947
      %v1021 = vpack.c.b16 %v950, %v949
      %v1022 = vpack.c.b16 %v952, %v951
      %v1023 = vpack.c.b16 %v954, %v953
      %v1024 = vpack.c.b16 %v956, %v955
      %v1025 = vpack.c.b16 %v958, %v957
      %v1026 = vpack.c.b16 %v960, %v959
      %v1027 = vpack.c.b16 %v962, %v961
      %v1028 = vpack.c.b16 %v964, %v963
      %v1029 = vpack.c.b16 %v966, %v965
      %v1030 = vpack.c.b16 %v968, %v967
      %v1031 = vpack.c.b16 %v970, %v969
      %v1032 = vpack.c.b16 %v972, %v971
      %v1033 = vpack.c.b16 %v974, %v973
      %v1034 = vpack.c.b16 %v976, %v975
      %v1035 = vpack.c.b16 %v978, %v977
      %v1036 = vpack.c.b16 %v980, %v979
      %1093 = vmatprep.subr.bf16.mxu0 0
      %1094 = vmatpush1.bf16.msra.mxu0 %v981
      %1095 = vmatprep.subr.bf16.mxu0 0
      %1096 = vmatpush1.bf16.msra.mxu0 %v982
      %1097 = vmatprep.subr.bf16.mxu0 0
      %1098 = vmatpush1.bf16.msra.mxu0 %v983
      %1099 = vmatprep.subr.bf16.mxu0 0
      %1100 = vmatpush1.bf16.msra.mxu0 %v984
      %1101 = vmatprep.subr.bf16.mxu0 0
      %1102 = vmatpush1.bf16.msra.mxu0 %v985
      %1103 = vmatprep.subr.bf16.mxu0 0
      %1104 = vmatpush1.bf16.msra.mxu0 %v986
      %1105 = vmatprep.subr.bf16.mxu0 0
      %1106 = vmatpush1.bf16.msra.mxu0 %v987
      %1107 = vmatprep.subr.bf16.mxu0 0
      %1108 = vmatpush1.bf16.msra.mxu0 %v988
      %1109 = vmatprep.subr.bf16.mxu0 0
      %1110 = vmatpush1.bf16.msra.mxu0 %v989
      %1111 = vmatprep.subr.bf16.mxu0 0
      %1112 = vmatpush1.bf16.msra.mxu0 %v990
      %1113 = vmatprep.subr.bf16.mxu0 0
      %1114 = vmatpush1.bf16.msra.mxu0 %v991
      %1115 = vmatprep.subr.bf16.mxu0 0
      %1116 = vmatpush1.bf16.msra.mxu0 %v992
      %1117 = vmatprep.subr.bf16.mxu0 0
      %1118 = vmatpush1.bf16.msra.mxu0 %v993
      %1119 = vmatprep.subr.bf16.mxu0 0
      %1120 = vmatpush1.bf16.msra.mxu0 %v994
      %1121 = vmatprep.subr.bf16.mxu0 0
      %1122 = vmatpush1.bf16.msra.mxu0 %v995
      %1123 = vmatprep.subr.bf16.mxu0 0
      %1124 = vmatpush1.bf16.msra.mxu0 %v996
      %1125 = vmatprep.mubr.bf16.mxu0 %v646
      %1126 = vmatmul.mubr.bf16.gmra.mrb[0].mxu0 %v645
      %v1127 = vpop.f32.mrb[0].mxu0
      %v1128 = vadd.f32 %v467, %v1127
      %v1129 = vpop.f32.mrb[0].mxu0
      %v1130 = vpop.f32.mrb[0].mxu0
      %v1131 = vadd.f32 %v467, %v1130
      %v1132 = vpop.f32.mrb[0].mxu0
      %1133 = vmatprep.mubr.bf16.mxu0 %v653
      %1134 = vmatmul.mubr.bf16.gmra.mrb[0].mxu0 %v652
      %v1135 = vpop.f32.mrb[0].mxu0
      %v1136 = vadd.f32 %v467, %v1135
      %v1137 = vpop.f32.mrb[0].mxu0
      %v1138 = vpop.f32.mrb[0].mxu0
      %v1139 = vadd.f32 %v467, %v1138
      %v1140 = vpop.f32.mrb[0].mxu0
      %1141 = vmatprep.mubr.bf16.mxu0 %v660
      %1142 = vmatmul.mubr.bf16.gmra.mrb[0].mxu0 %v659
      %v1143 = vpop.f32.mrb[0].mxu0
      %v1144 = vadd.f32 %v467, %v1143
      %v1145 = vpop.f32.mrb[0].mxu0
      %v1146 = vpop.f32.mrb[0].mxu0
      %v1147 = vadd.f32 %v467, %v1146
      %v1148 = vpop.f32.mrb[0].mxu0
      %1149 = vmatprep.mubr.bf16.mxu0 %v667
      %1150 = vmatmul.mubr.bf16.gmra.mrb[0].mxu0 %v666
      %v1151 = vpop.f32.mrb[0].mxu0
      %v1152 = vadd.f32 %v467, %v1151
      %v1153 = vpop.f32.mrb[0].mxu0
      %v1154 = vpop.f32.mrb[0].mxu0
      %v1155 = vadd.f32 %v467, %v1154
      %v1156 = vpop.f32.mrb[0].mxu0
      %1157 = vmatprep.mubr.bf16.mxu0 %v674
      %1158 = vmatmul.mubr.bf16.gmra.mrb[0].mxu0 %v673
      %v1159 = vpop.f32.mrb[0].mxu0
      %v1160 = vadd.f32 %v467, %v1159
      %v1161 = vpop.f32.mrb[0].mxu0
      %v1162 = vpop.f32.mrb[0].mxu0
      %v1163 = vadd.f32 %v467, %v1162
      %v1164 = vpop.f32.mrb[0].mxu0
      %1165 = vmatprep.mubr.bf16.mxu0 %v681
      %1166 = vmatmul.mubr.bf16.gmra.mrb[0].mxu0 %v680
      %v1167 = vpop.f32.mrb[0].mxu0
      %v1168 = vadd.f32 %v467, %v1167
      %v1169 = vpop.f32.mrb[0].mxu0
      %v1170 = vpop.f32.mrb[0].mxu0
      %v1171 = vadd.f32 %v467, %v1170
      %v1172 = vpop.f32.mrb[0].mxu0
      %1173 = vmatprep.mubr.bf16.mxu0 %v688
      %1174 = vmatmul.mubr.bf16.gmra.mrb[0].mxu0 %v687
      %v1175 = vpop.f32.mrb[0].mxu0
      %v1176 = vadd.f32 %v467, %v1175
      %v1177 = vpop.f32.mrb[0].mxu0
      %v1178 = vpop.f32.mrb[0].mxu0
      %v1179 = vadd.f32 %v467, %v1178
      %v1180 = vpop.f32.mrb[0].mxu0
      %1181 = vmatprep.mubr.bf16.mxu0 %v695
      %1182 = vmatmul.mubr.bf16.gmra.mrb[0].mxu0 %v694
      %v1183 = vpop.f32.mrb[0].mxu0
      %v1184 = vadd.f32 %v467, %v1183
      %v1185 = vpop.f32.mrb[0].mxu0
      %v1186 = vpop.f32.mrb[0].mxu0
      %v1187 = vadd.f32 %v467, %v1186
      %v1188 = vpop.f32.mrb[0].mxu0
      %1189 = vdwg.mxu0
      %1190 = vmatprep.subr.bf16.mxu0 0
      %1191 = vmatpush1.bf16.msra.mxu0 %v997
      %1192 = vmatprep.subr.bf16.mxu0 0
      %1193 = vmatpush1.bf16.msra.mxu0 %v998
      %1194 = vmatprep.subr.bf16.mxu0 0
      %1195 = vmatpush1.bf16.msra.mxu0 %v999
      %1196 = vmatprep.subr.bf16.mxu0 0
      %1197 = vmatpush1.bf16.msra.mxu0 %v1000
      %1198 = vmatprep.subr.bf16.mxu0 0
      %1199 = vmatpush1.bf16.msra.mxu0 %v1001
      %1200 = vmatprep.subr.bf16.mxu0 0
      %1201 = vmatpush1.bf16.msra.mxu0 %v1002
      %1202 = vmatprep.subr.bf16.mxu0 0
      %1203 = vmatpush1.bf16.msra.mxu0 %v1003
      %1204 = vmatprep.subr.bf16.mxu0 0
      %1205 = vmatpush1.bf16.msra.mxu0 %v1004
      %1206 = vmatprep.subr.bf16.mxu0 0
      %1207 = vmatpush1.bf16.msra.mxu0 %v1005
      %1208 = vmatprep.subr.bf16.mxu0 0
      %1209 = vmatpush1.bf16.msra.mxu0 %v1006
      %1210 = vmatprep.subr.bf16.mxu0 0
      %1211 = vmatpush1.bf16.msra.mxu0 %v1007
      %1212 = vmatprep.subr.bf16.mxu0 0
      %1213 = vmatpush1.bf16.msra.mxu0 %v1008
      %1214 = vmatprep.subr.bf16.mxu0 0
      %1215 = vmatpush1.bf16.msra.mxu0 %v1009
      %1216 = vmatprep.subr.bf16.mxu0 0
      %1217 = vmatpush1.bf16.msra.mxu0 %v1010
      %1218 = vmatprep.subr.bf16.mxu0 0
      %1219 = vmatpush1.bf16.msra.mxu0 %v1011
      %1220 = vmatprep.subr.bf16.mxu0 0
      %1221 = vmatpush1.bf16.msra.mxu0 %v1012
      %1222 = vmatprep.mubr.bf16.mxu0 %v648
      %1223 = vmatmul.mubr.bf16.gmra.mrb[0].mxu0 %v647
      %v1224 = vpop.f32.mrb[0].mxu0
      %v1225 = vadd.f32 %v1128, %v1224
      %v1226 = vpop.f32.mrb[0].mxu0
      %v1227 = vpop.f32.mrb[0].mxu0
      %v1228 = vadd.f32 %v1131, %v1227
      %v1229 = vpop.f32.mrb[0].mxu0
      %1230 = vmatprep.mubr.bf16.mxu0 %v655
      %1231 = vmatmul.mubr.bf16.gmra.mrb[0].mxu0 %v654
      %v1232 = vpop.f32.mrb[0].mxu0
      %v1233 = vadd.f32 %v1136, %v1232
      %v1234 = vpop.f32.mrb[0].mxu0
      %v1235 = vpop.f32.mrb[0].mxu0
      %v1236 = vadd.f32 %v1139, %v1235
      %v1237 = vpop.f32.mrb[0].mxu0
      %1238 = vmatprep.mubr.bf16.mxu0 %v662
      %1239 = vmatmul.mubr.bf16.gmra.mrb[0].mxu0 %v661
      %v1240 = vpop.f32.mrb[0].mxu0
      %v1241 = vadd.f32 %v1144, %v1240
      %v1242 = vpop.f32.mrb[0].mxu0
      %v1243 = vpop.f32.mrb[0].mxu0
      %v1244 = vadd.f32 %v1147, %v1243
      %v1245 = vpop.f32.mrb[0].mxu0
      %1246 = vmatprep.mubr.bf16.mxu0 %v669
      %1247 = vmatmul.mubr.bf16.gmra.mrb[0].mxu0 %v668
      %v1248 = vpop.f32.mrb[0].mxu0
      %v1249 = vadd.f32 %v1152, %v1248
      %v1250 = vpop.f32.mrb[0].mxu0
      %v1251 = vpop.f32.mrb[0].mxu0
      %v1252 = vadd.f32 %v1155, %v1251
      %v1253 = vpop.f32.mrb[0].mxu0
      %1254 = vmatprep.mubr.bf16.mxu0 %v676
      %1255 = vmatmul.mubr.bf16.gmra.mrb[0].mxu0 %v675
      %v1256 = vpop.f32.mrb[0].mxu0
      %v1257 = vadd.f32 %v1160, %v1256
      %v1258 = vpop.f32.mrb[0].mxu0
      %v1259 = vpop.f32.mrb[0].mxu0
      %v1260 = vadd.f32 %v1163, %v1259
      %v1261 = vpop.f32.mrb[0].mxu0
      %1262 = vmatprep.mubr.bf16.mxu0 %v683
      %1263 = vmatmul.mubr.bf16.gmra.mrb[0].mxu0 %v682
      %v1264 = vpop.f32.mrb[0].mxu0
      %v1265 = vadd.f32 %v1168, %v1264
      %v1266 = vpop.f32.mrb[0].mxu0
      %v1267 = vpop.f32.mrb[0].mxu0
      %v1268 = vadd.f32 %v1171, %v1267
      %v1269 = vpop.f32.mrb[0].mxu0
      %1270 = vmatprep.mubr.bf16.mxu0 %v690
      %1271 = vmatmul.mubr.bf16.gmra.mrb[0].mxu0 %v689
      %v1272 = vpop.f32.mrb[0].mxu0
      %v1273 = vadd.f32 %v1176, %v1272
      %v1274 = vpop.f32.mrb[0].mxu0
      %v1275 = vpop.f32.mrb[0].mxu0
      %v1276 = vadd.f32 %v1179, %v1275
      %v1277 = vpop.f32.mrb[0].mxu0
      %1278 = vmatprep.mubr.bf16.mxu0 %v697
      %1279 = vmatmul.mubr.bf16.gmra.mrb[0].mxu0 %v696
      %v1280 = vpop.f32.mrb[0].mxu0
      %v1281 = vadd.f32 %v1184, %v1280
      %v1282 = vpop.f32.mrb[0].mxu0
      %v1283 = vpop.f32.mrb[0].mxu0
      %v1284 = vadd.f32 %v1187, %v1283
      %v1285 = vpop.f32.mrb[0].mxu0
      %1286 = vdwg.mxu0
      %1287 = vmatprep.subr.bf16.mxu0 0
      %1288 = vmatpush1.bf16.msra.mxu0 %v1013
      %1289 = vmatprep.subr.bf16.mxu0 0
      %1290 = vmatpush1.bf16.msra.mxu0 %v1014
      %1291 = vmatprep.subr.bf16.mxu0 0
      %1292 = vmatpush1.bf16.msra.mxu0 %v1015
      %1293 = vmatprep.subr.bf16.mxu0 0
      %1294 = vmatpush1.bf16.msra.mxu0 %v1016
      %1295 = vmatprep.subr.bf16.mxu0 0
      %1296 = vmatpush1.bf16.msra.mxu0 %v1017
      %1297 = vmatprep.subr.bf16.mxu0 0
      %1298 = vmatpush1.bf16.msra.mxu0 %v1018
      %1299 = vmatprep.subr.bf16.mxu0 0
      %1300 = vmatpush1.bf16.msra.mxu0 %v1019
      %1301 = vmatprep.subr.bf16.mxu0 0
      %1302 = vmatpush1.bf16.msra.mxu0 %v1020
      %1303 = vmatprep.subr.bf16.mxu0 0
      %1304 = vmatpush1.bf16.msra.mxu0 %v1021
      %1305 = vmatprep.subr.bf16.mxu0 0
      %1306 = vmatpush1.bf16.msra.mxu0 %v1022
      %1307 = vmatprep.subr.bf16.mxu0 0
      %1308 = vmatpush1.bf16.msra.mxu0 %v1023
      %1309 = vmatprep.subr.bf16.mxu0 0
      %1310 = vmatpush1.bf16.msra.mxu0 %v1024
      %1311 = vmatprep.subr.bf16.mxu0 0
      %1312 = vmatpush1.bf16.msra.mxu0 %v1025
      %1313 = vmatprep.subr.bf16.mxu0 0
      %1314 = vmatpush1.bf16.msra.mxu0 %v1026
      %1315 = vmatprep.subr.bf16.mxu0 0
      %1316 = vmatpush1.bf16.msra.mxu0 %v1027
      %1317 = vmatprep.subr.bf16.mxu0 0
      %1318 = vmatpush1.bf16.msra.mxu0 %v1028
      %1319 = vmatprep.mubr.bf16.mxu0 %v650
      %1320 = vmatmul.mubr.bf16.gmra.mrb[0].mxu0 %v649
      %v1321 = vpop.f32.mrb[0].mxu0
      %v1322 = vadd.f32 %v1225, %v1321
      %v1323 = vpop.f32.mrb[0].mxu0
      %v1324 = vpop.f32.mrb[0].mxu0
      %v1325 = vadd.f32 %v1228, %v1324
      %v1326 = vpop.f32.mrb[0].mxu0
      %1327 = vmatprep.mubr.bf16.mxu0 %v657
      %1328 = vmatmul.mubr.bf16.gmra.mrb[0].mxu0 %v656
      %v1329 = vpop.f32.mrb[0].mxu0
      %v1330 = vadd.f32 %v1233, %v1329
      %v1331 = vpop.f32.mrb[0].mxu0
      %v1332 = vpop.f32.mrb[0].mxu0
      %v1333 = vadd.f32 %v1236, %v1332
      %v1334 = vpop.f32.mrb[0].mxu0
      %1335 = vmatprep.mubr.bf16.mxu0 %v664
      %1336 = vmatmul.mubr.bf16.gmra.mrb[0].mxu0 %v663
      %v1337 = vpop.f32.mrb[0].mxu0
      %v1338 = vadd.f32 %v1241, %v1337
      %v1339 = vpop.f32.mrb[0].mxu0
      %v1340 = vpop.f32.mrb[0].mxu0
      %v1341 = vadd.f32 %v1244, %v1340
      %v1342 = vpop.f32.mrb[0].mxu0
      %1343 = vmatprep.mubr.bf16.mxu0 %v671
      %1344 = vmatmul.mubr.bf16.gmra.mrb[0].mxu0 %v670
      %v1345 = vpop.f32.mrb[0].mxu0
      %v1346 = vadd.f32 %v1249, %v1345
      %v1347 = vpop.f32.mrb[0].mxu0
      %v1348 = vpop.f32.mrb[0].mxu0
      %v1349 = vadd.f32 %v1252, %v1348
      %v1350 = vpop.f32.mrb[0].mxu0
      %1351 = vmatprep.mubr.bf16.mxu0 %v678
      %1352 = vmatmul.mubr.bf16.gmra.mrb[0].mxu0 %v677
      %v1353 = vpop.f32.mrb[0].mxu0
      %v1354 = vadd.f32 %v1257, %v1353
      %v1355 = vpop.f32.mrb[0].mxu0
      %v1356 = vpop.f32.mrb[0].mxu0
      %v1357 = vadd.f32 %v1260, %v1356
      %v1358 = vpop.f32.mrb[0].mxu0
      %1359 = vmatprep.mubr.bf16.mxu0 %v685
      %1360 = vmatmul.mubr.bf16.gmra.mrb[0].mxu0 %v684
      %v1361 = vpop.f32.mrb[0].mxu0
      %v1362 = vadd.f32 %v1265, %v1361
      %v1363 = vpop.f32.mrb[0].mxu0
      %v1364 = vpop.f32.mrb[0].mxu0
      %v1365 = vadd.f32 %v1268, %v1364
      %v1366 = vpop.f32.mrb[0].mxu0
      %1367 = vmatprep.mubr.bf16.mxu0 %v692
      %1368 = vmatmul.mubr.bf16.gmra.mrb[0].mxu0 %v691
      %v1369 = vpop.f32.mrb[0].mxu0
      %v1370 = vadd.f32 %v1273, %v1369
      %v1371 = vpop.f32.mrb[0].mxu0
      %v1372 = vpop.f32.mrb[0].mxu0
      %v1373 = vadd.f32 %v1276, %v1372
      %v1374 = vpop.f32.mrb[0].mxu0
      %1375 = vmatprep.mubr.bf16.mxu0 %v699
      %1376 = vmatmul.mubr.bf16.gmra.mrb[0].mxu0 %v698
      %v1377 = vpop.f32.mrb[0].mxu0
      %v1378 = vadd.f32 %v1281, %v1377
      %v1379 = vpop.f32.mrb[0].mxu0
      %v1380 = vpop.f32.mrb[0].mxu0
      %v1381 = vadd.f32 %v1284, %v1380
      %v1382 = vpop.f32.mrb[0].mxu0
      %1383 = vdwg.mxu0
      %1384 = vmatprep.subr.bf16.mxu0 0
      %1385 = vmatpush1.bf16.msra.mxu0 %v1029
      %1386 = vmatprep.subr.bf16.mxu0 0
      %1387 = vmatpush1.bf16.msra.mxu0 %v1030
      %1388 = vmatprep.subr.bf16.mxu0 0
      %1389 = vmatpush1.bf16.msra.mxu0 %v1031
      %1390 = vmatprep.subr.bf16.mxu0 0
      %1391 = vmatpush1.bf16.msra.mxu0 %v1032
      %1392 = vmatprep.subr.bf16.mxu0 0
      %1393 = vmatpush1.bf16.msra.mxu0 %v1033
      %1394 = vmatprep.subr.bf16.mxu0 0
      %1395 = vmatpush1.bf16.msra.mxu0 %v1034
      %1396 = vmatprep.subr.bf16.mxu0 0
      %1397 = vmatpush1.bf16.msra.mxu0 %v1035
      %1398 = vmatprep.subr.bf16.mxu0 0
      %1399 = vmatpush1.bf16.msra.mxu0 %v1036
      %1400 = vmatprep.subr.bf16.mxu0 0
      %1401 = vmatpush1.bf16.msra.mxu0 0
      %1402 = vmatprep.subr.bf16.mxu0 0
      %1403 = vmatpush1.bf16.msra.mxu0 0
      %1404 = vmatprep.subr.bf16.mxu0 0
      %1405 = vmatpush1.bf16.msra.mxu0 0
      %1406 = vmatprep.subr.bf16.mxu0 0
      %1407 = vmatpush1.bf16.msra.mxu0 0
      %1408 = vmatprep.subr.bf16.mxu0 0
      %1409 = vmatpush1.bf16.msra.mxu0 0
      %1410 = vmatprep.subr.bf16.mxu0 0
      %1411 = vmatpush1.bf16.msra.mxu0 0
      %1412 = vmatprep.subr.bf16.mxu0 0
      %1413 = vmatpush1.bf16.msra.mxu0 0
      %1414 = vmatprep.subr.bf16.mxu0 0
      %1415 = vmatpush1.bf16.msra.mxu0 0
      %1416 = vmatprep.mubr.bf16.mxu0 0
      %1417 = vmatmul.mubr.bf16.gmra.mrb[0].mxu0 %v651
      %v1418 = vpop.f32.mrb[0].mxu0
      %v1419 = vadd.f32 %v1322, %v1418
      %v1420 = vpop.f32.mrb[0].mxu0
      %v1421 = vpop.f32.mrb[0].mxu0
      %v1422 = vadd.f32 %v1325, %v1421
      %v1423 = vpop.f32.mrb[0].mxu0
      %1424 = vmatprep.mubr.bf16.mxu0 0
      %1425 = vmatmul.mubr.bf16.gmra.mrb[0].mxu0 %v658
      %v1426 = vpop.f32.mrb[0].mxu0
      %v1427 = vadd.f32 %v1330, %v1426
      %v1428 = vpop.f32.mrb[0].mxu0
      %v1429 = vpop.f32.mrb[0].mxu0
      %v1430 = vadd.f32 %v1333, %v1429
      %v1431 = vpop.f32.mrb[0].mxu0
      %1432 = vmatprep.mubr.bf16.mxu0 0
      %1433 = vmatmul.mubr.bf16.gmra.mrb[0].mxu0 %v665
      %v1434 = vpop.f32.mrb[0].mxu0
      %v1435 = vadd.f32 %v1338, %v1434
      %v1436 = vpop.f32.mrb[0].mxu0
      %v1437 = vpop.f32.mrb[0].mxu0
      %v1438 = vadd.f32 %v1341, %v1437
      %v1439 = vpop.f32.mrb[0].mxu0
      %1440 = vmatprep.mubr.bf16.mxu0 0
      %1441 = vmatmul.mubr.bf16.gmra.mrb[0].mxu0 %v672
      %v1442 = vpop.f32.mrb[0].mxu0
      %v1443 = vadd.f32 %v1346, %v1442
      %v1444 = vpop.f32.mrb[0].mxu0
      %v1445 = vpop.f32.mrb[0].mxu0
      %v1446 = vadd.f32 %v1349, %v1445
      %v1447 = vpop.f32.mrb[0].mxu0
      %1448 = vmatprep.mubr.bf16.mxu0 0
      %1449 = vmatmul.mubr.bf16.gmra.mrb[0].mxu0 %v679
      %v1450 = vpop.f32.mrb[0].mxu0
      %v1451 = vadd.f32 %v1354, %v1450
      %v1452 = vpop.f32.mrb[0].mxu0
      %v1453 = vpop.f32.mrb[0].mxu0
      %v1454 = vadd.f32 %v1357, %v1453
      %v1455 = vpop.f32.mrb[0].mxu0
      %1456 = vmatprep.mubr.bf16.mxu0 0
      %1457 = vmatmul.mubr.bf16.gmra.mrb[0].mxu0 %v686
      %v1458 = vpop.f32.mrb[0].mxu0
      %v1459 = vadd.f32 %v1362, %v1458
      %v1460 = vpop.f32.mrb[0].mxu0
      %v1461 = vpop.f32.mrb[0].mxu0
      %v1462 = vadd.f32 %v1365, %v1461
      %v1463 = vpop.f32.mrb[0].mxu0
      %1464 = vmatprep.mubr.bf16.mxu0 0
      %1465 = vmatmul.mubr.bf16.gmra.mrb[0].mxu0 %v693
      %v1466 = vpop.f32.mrb[0].mxu0
      %v1467 = vadd.f32 %v1370, %v1466
      %v1468 = vpop.f32.mrb[0].mxu0
      %v1469 = vpop.f32.mrb[0].mxu0
      %v1470 = vadd.f32 %v1373, %v1469
      %v1471 = vpop.f32.mrb[0].mxu0
      %1472 = vmatprep.mubr.bf16.mxu0 0
      %1473 = vmatmul.mubr.bf16.gmra.mrb[0].mxu0 %v700
      %v1474 = vpop.f32.mrb[0].mxu0
      %v1475 = vadd.f32 %v1378, %v1474
      %v1476 = vpop.f32.mrb[0].mxu0
      %v1477 = vpop.f32.mrb[0].mxu0
      %v1478 = vadd.f32 %v1381, %v1477
      %v1479 = vpop.f32.mrb[0].mxu0
      %1480 = vdwg.mxu0
      %v1481 = vmax.f32 %v1419, 0.0
      %v1482 = vmax.f32 %v1422, 0.0
      %v1483 = vmax.f32 %v1427, 0.0
      %v1484 = vmax.f32 %v1430, 0.0
      %v1485 = vmax.f32 %v1435, 0.0
      %v1486 = vmax.f32 %v1438, 0.0
      %v1487 = vmax.f32 %v1443, 0.0
      %v1488 = vmax.f32 %v1446, 0.0
      %v1489 = vmax.f32 %v1451, 0.0
      %v1490 = vmax.f32 %v1454, 0.0
      %v1491 = vmax.f32 %v1459, 0.0
      %v1492 = vmax.f32 %v1462, 0.0
      %v1493 = vmax.f32 %v1467, 0.0
      %v1494 = vmax.f32 %v1470, 0.0
      %v1495 = vmax.f32 %v1475, 0.0
      %v1496 = vmax.f32 %v1478, 0.0
      %v1497 = vpack.c.bf16 %v1482, %v1481
      %v1498 = vpack.c.bf16 %v1484, %v1483
      %v1499 = vpack.c.bf16 %v1486, %v1485
      %v1500 = vpack.c.bf16 %v1488, %v1487
      %v1501 = vpack.c.bf16 %v1490, %v1489
      %v1502 = vpack.c.bf16 %v1492, %v1491
      %v1503 = vpack.c.bf16 %v1494, %v1493
      %v1504 = vpack.c.bf16 %v1496, %v1495
      %v1505 = vld [vmem:[%s3] sm:$0xf]
      %v1506 = vld [vmem:[%s3 + $0x4] sm:$0xf]
      %v1507 = vld [vmem:[%s3 + $0x8] sm:$0xf]
      %v1508 = vld [vmem:[%s3 + $0xc] sm:$0xf]
      %v1509 = vld [vmem:[%s3 + $0x10] sm:$0xf]
      %v1510 = vld [vmem:[%s3 + $0x14] sm:$0xf]
      %v1511 = vld [vmem:[%s3 + $0x18] sm:$0xf]
      %v1512 = vld [vmem:[%s3 + $0x1c] sm:$0xf]
      %v1513 = vld [vmem:[%s3 + $0x20] sm:$0xf]
      %v1514 = vld [vmem:[%s3 + $0x24] sm:$0xf]
      %v1515 = vld [vmem:[%s3 + $0x28] sm:$0xf]
      %v1516 = vld [vmem:[%s3 + $0x2c] sm:$0xf]
      %v1517 = vld [vmem:[%s3 + $0x30] sm:$0xf]
      %v1518 = vld [vmem:[%s3 + $0x34] sm:$0xf]
      %v1519 = vld [vmem:[%s3 + $0x38] sm:$0xf]
      %v1520 = vld [vmem:[%s3 + $0x3c] sm:$0xf]
      %v1521 = vld [vmem:[%s4] sm:$0x1]
      %v1523 = vlaneseq
      %v1524 = vshrl.u32 %v1523, 7
      %v1525 = vsub.s32 0, %v1524
      %v1526 = vrot.slane %v1521, %v1525
      %v1544 = vunpack.c.l.b16 %v1505
      %v1545 = vunpack.c.l.b16 %v1506
      %v1546 = vunpack.c.l.b16 %v1507
      %v1547 = vunpack.c.l.b16 %v1508
      %v1548 = vunpack.c.l.b16 %v1509
      %v1549 = vunpack.c.l.b16 %v1510
      %v1550 = vunpack.c.l.b16 %v1511
      %v1551 = vunpack.c.l.b16 %v1512
      %v1552 = vunpack.c.l.b16 %v1513
      %v1553 = vunpack.c.l.b16 %v1514
      %v1554 = vunpack.c.l.b16 %v1515
      %v1555 = vunpack.c.l.b16 %v1516
      %v1556 = vunpack.c.l.b16 %v1517
      %v1557 = vunpack.c.l.b16 %v1518
      %v1558 = vunpack.c.l.b16 %v1519
      %v1559 = vunpack.c.l.b16 %v1520
      %v1560 = vpack.c.b16 %v1545, %v1544
      %v1561 = vpack.c.b16 %v1547, %v1546
      %v1562 = vpack.c.b16 %v1549, %v1548
      %v1563 = vpack.c.b16 %v1551, %v1550
      %v1564 = vpack.c.b16 %v1553, %v1552
      %v1565 = vpack.c.b16 %v1555, %v1554
      %v1566 = vpack.c.b16 %v1557, %v1556
      %v1567 = vpack.c.b16 %v1559, %v1558
      %1576 = vmatprep.subr.bf16.mxu0 0
      %1577 = vmatpush1.bf16.msra.mxu0 %v1560
      %1578 = vmatprep.subr.bf16.mxu0 0
      %1579 = vmatpush1.bf16.msra.mxu0 %v1561
      %1580 = vmatprep.subr.bf16.mxu0 0
      %1581 = vmatpush1.bf16.msra.mxu0 %v1562
      %1582 = vmatprep.subr.bf16.mxu0 0
      %1583 = vmatpush1.bf16.msra.mxu0 %v1563
      %1584 = vmatprep.subr.bf16.mxu0 0
      %1585 = vmatpush1.bf16.msra.mxu0 %v1564
      %1586 = vmatprep.subr.bf16.mxu0 0
      %1587 = vmatpush1.bf16.msra.mxu0 %v1565
      %1588 = vmatprep.subr.bf16.mxu0 0
      %1589 = vmatpush1.bf16.msra.mxu0 %v1566
      %1590 = vmatprep.subr.bf16.mxu0 0
      %1591 = vmatpush1.bf16.msra.mxu0 %v1567
      %1592 = vmatprep.subr.bf16.mxu0 0
      %1593 = vmatpush1.bf16.msra.mxu0 0
      %1594 = vmatprep.subr.bf16.mxu0 0
      %1595 = vmatpush1.bf16.msra.mxu0 0
      %1596 = vmatprep.subr.bf16.mxu0 0
      %1597 = vmatpush1.bf16.msra.mxu0 0
      %1598 = vmatprep.subr.bf16.mxu0 0
      %1599 = vmatpush1.bf16.msra.mxu0 0
      %1600 = vmatprep.subr.bf16.mxu0 0
      %1601 = vmatpush1.bf16.msra.mxu0 0
      %1602 = vmatprep.subr.bf16.mxu0 0
      %1603 = vmatpush1.bf16.msra.mxu0 0
      %1604 = vmatprep.subr.bf16.mxu0 0
      %1605 = vmatpush1.bf16.msra.mxu0 0
      %1606 = vmatprep.subr.bf16.mxu0 0
      %1607 = vmatpush1.bf16.msra.mxu0 0
      %1608 = vmatprep.mubr.bf16.mxu0 0
      %1609 = vmatmul.mubr.bf16.gmra.mrb[0].mxu0 %v1497
      %v1610 = vpop.f32.mrb[0].mxu0
      %v1611 = vadd.f32 %v1526, %v1610
      %v1612 = vpop.f32.mrb[0].mxu0
      %v1613 = vpop.f32.mrb[0].mxu0
      %v1614 = vadd.f32 %v1526, %v1613
      %v1615 = vpop.f32.mrb[0].mxu0
      %1616 = vmatprep.mubr.bf16.mxu0 0
      %1617 = vmatmul.mubr.bf16.gmra.mrb[0].mxu0 %v1498
      %v1618 = vpop.f32.mrb[0].mxu0
      %v1619 = vadd.f32 %v1526, %v1618
      %v1620 = vpop.f32.mrb[0].mxu0
      %v1621 = vpop.f32.mrb[0].mxu0
      %v1622 = vadd.f32 %v1526, %v1621
      %v1623 = vpop.f32.mrb[0].mxu0
      %1624 = vmatprep.mubr.bf16.mxu0 0
      %1625 = vmatmul.mubr.bf16.gmra.mrb[0].mxu0 %v1499
      %v1626 = vpop.f32.mrb[0].mxu0
      %v1627 = vadd.f32 %v1526, %v1626
      %v1628 = vpop.f32.mrb[0].mxu0
      %v1629 = vpop.f32.mrb[0].mxu0
      %v1630 = vadd.f32 %v1526, %v1629
      %v1631 = vpop.f32.mrb[0].mxu0
      %1632 = vmatprep.mubr.bf16.mxu0 0
      %1633 = vmatmul.mubr.bf16.gmra.mrb[0].mxu0 %v1500
      %v1634 = vpop.f32.mrb[0].mxu0
      %v1635 = vadd.f32 %v1526, %v1634
      %v1636 = vpop.f32.mrb[0].mxu0
      %v1637 = vpop.f32.mrb[0].mxu0
      %v1638 = vadd.f32 %v1526, %v1637
      %v1639 = vpop.f32.mrb[0].mxu0
      %1640 = vmatprep.mubr.bf16.mxu0 0
      %1641 = vmatmul.mubr.bf16.gmra.mrb[0].mxu0 %v1501
      %v1642 = vpop.f32.mrb[0].mxu0
      %v1643 = vadd.f32 %v1526, %v1642
      %v1644 = vpop.f32.mrb[0].mxu0
      %v1645 = vpop.f32.mrb[0].mxu0
      %v1646 = vadd.f32 %v1526, %v1645
      %v1647 = vpop.f32.mrb[0].mxu0
      %1648 = vmatprep.mubr.bf16.mxu0 0
      %1649 = vmatmul.mubr.bf16.gmra.mrb[0].mxu0 %v1502
      %v1650 = vpop.f32.mrb[0].mxu0
      %v1651 = vadd.f32 %v1526, %v1650
      %v1652 = vpop.f32.mrb[0].mxu0
      %v1653 = vpop.f32.mrb[0].mxu0
      %v1654 = vadd.f32 %v1526, %v1653
      %v1655 = vpop.f32.mrb[0].mxu0
      %1656 = vmatprep.mubr.bf16.mxu0 0
      %1657 = vmatmul.mubr.bf16.gmra.mrb[0].mxu0 %v1503
      %v1658 = vpop.f32.mrb[0].mxu0
      %v1659 = vadd.f32 %v1526, %v1658
      %v1660 = vpop.f32.mrb[0].mxu0
      %v1661 = vpop.f32.mrb[0].mxu0
      %v1662 = vadd.f32 %v1526, %v1661
      %v1663 = vpop.f32.mrb[0].mxu0
      %1664 = vmatprep.mubr.bf16.mxu0 0
      %1665 = vmatmul.mubr.bf16.gmra.mrb[0].mxu0 %v1504
      %v1666 = vpop.f32.mrb[0].mxu0
      %v1667 = vadd.f32 %v1526, %v1666
      %v1668 = vpop.f32.mrb[0].mxu0
      %v1669 = vpop.f32.mrb[0].mxu0
      %v1670 = vadd.f32 %v1526, %v1669
      %v1671 = vpop.f32.mrb[0].mxu0
      %1672 = vdwg.mxu0
      %v1673 = vmax.f32 %v1611, 0.0
      %v1674 = vmax.f32 %v1614, 0.0
      %v1675 = vmax.f32 %v1619, 0.0
      %v1676 = vmax.f32 %v1622, 0.0
      %v1677 = vmax.f32 %v1627, 0.0
      %v1678 = vmax.f32 %v1630, 0.0
      %v1679 = vmax.f32 %v1635, 0.0
      %v1680 = vmax.f32 %v1638, 0.0
      %v1681 = vmax.f32 %v1643, 0.0
      %v1682 = vmax.f32 %v1646, 0.0
      %v1683 = vmax.f32 %v1651, 0.0
      %v1684 = vmax.f32 %v1654, 0.0
      %v1685 = vmax.f32 %v1659, 0.0
      %v1686 = vmax.f32 %v1662, 0.0
      %v1687 = vmax.f32 %v1667, 0.0
      %v1688 = vmax.f32 %v1670, 0.0
      %v1689 = vpack.c.bf16 %v1674, %v1673
      %v1690 = vpack.c.bf16 %v1676, %v1675
      %v1691 = vpack.c.bf16 %v1678, %v1677
      %v1692 = vpack.c.bf16 %v1680, %v1679
      %v1693 = vpack.c.bf16 %v1682, %v1681
      %v1694 = vpack.c.bf16 %v1684, %v1683
      %v1695 = vpack.c.bf16 %v1686, %v1685
      %v1696 = vpack.c.bf16 %v1688, %v1687
      %v1697 = vld [vmem:[%s5] sm:$0xf]
      %v1698 = vld [vmem:[%s5 + $0x4] sm:$0xf]
      %v1699 = vld [vmem:[%s5 + $0x8] sm:$0xf]
      %v1700 = vld [vmem:[%s5 + $0xc] sm:$0xf]
      %v1701 = vld [vmem:[%s5 + $0x10] sm:$0xf]
      %v1702 = vld [vmem:[%s5 + $0x14] sm:$0xf]
      %v1703 = vld [vmem:[%s5 + $0x18] sm:$0xf]
      %v1704 = vld [vmem:[%s5 + $0x1c] sm:$0xf]
      %v1705 = vld [vmem:[%s5 + $0x20] sm:$0xf]
      %v1706 = vld [vmem:[%s5 + $0x24] sm:$0xf]
      %v1707 = vld [vmem:[%s5 + $0x28] sm:$0xf]
      %v1708 = vld [vmem:[%s5 + $0x2c] sm:$0xf]
      %v1709 = vld [vmem:[%s5 + $0x30] sm:$0xf]
      %v1710 = vld [vmem:[%s5 + $0x34] sm:$0xf]
      %v1711 = vld [vmem:[%s5 + $0x38] sm:$0xf]
      %v1712 = vld [vmem:[%s5 + $0x3c] sm:$0xf]
      %v1713 = vld [vmem:[%s6] sm:$0x1]
      %v1715 = vlaneseq
      %v1716 = vshrl.u32 %v1715, 7
      %v1717 = vsub.s32 0, %v1716
      %v1718 = vrot.slane %v1713, %v1717
      %v1736 = vunpack.c.l.b16 %v1697
      %v1737 = vunpack.c.l.b16 %v1698
      %v1738 = vunpack.c.l.b16 %v1699
      %v1739 = vunpack.c.l.b16 %v1700
      %v1740 = vunpack.c.l.b16 %v1701
      %v1741 = vunpack.c.l.b16 %v1702
      %v1742 = vunpack.c.l.b16 %v1703
      %v1743 = vunpack.c.l.b16 %v1704
      %v1744 = vunpack.c.l.b16 %v1705
      %v1745 = vunpack.c.l.b16 %v1706
      %v1746 = vunpack.c.l.b16 %v1707
      %v1747 = vunpack.c.l.b16 %v1708
      %v1748 = vunpack.c.l.b16 %v1709
      %v1749 = vunpack.c.l.b16 %v1710
      %v1750 = vunpack.c.l.b16 %v1711
      %v1751 = vunpack.c.l.b16 %v1712
      %v1752 = vpack.c.b16 %v1737, %v1736
      %v1753 = vpack.c.b16 %v1739, %v1738
      %v1754 = vpack.c.b16 %v1741, %v1740
      %v1755 = vpack.c.b16 %v1743, %v1742
      %v1756 = vpack.c.b16 %v1745, %v1744
      %v1757 = vpack.c.b16 %v1747, %v1746
      %v1758 = vpack.c.b16 %v1749, %v1748
      %v1759 = vpack.c.b16 %v1751, %v1750
      %1768 = vmatprep.subr.bf16.mxu0 0
      %1769 = vmatpush1.bf16.msra.mxu0 %v1752
      %1770 = vmatprep.subr.bf16.mxu0 0
      %1771 = vmatpush1.bf16.msra.mxu0 %v1753
      %1772 = vmatprep.subr.bf16.mxu0 0
      %1773 = vmatpush1.bf16.msra.mxu0 %v1754
      %1774 = vmatprep.subr.bf16.mxu0 0
      %1775 = vmatpush1.bf16.msra.mxu0 %v1755
      %1776 = vmatprep.subr.bf16.mxu0 0
      %1777 = vmatpush1.bf16.msra.mxu0 %v1756
      %1778 = vmatprep.subr.bf16.mxu0 0
      %1779 = vmatpush1.bf16.msra.mxu0 %v1757
      %1780 = vmatprep.subr.bf16.mxu0 0
      %1781 = vmatpush1.bf16.msra.mxu0 %v1758
      %1782 = vmatprep.subr.bf16.mxu0 0
      %1783 = vmatpush1.bf16.msra.mxu0 %v1759
      %1784 = vmatprep.subr.bf16.mxu0 0
      %1785 = vmatpush1.bf16.msra.mxu0 0
      %1786 = vmatprep.subr.bf16.mxu0 0
      %1787 = vmatpush1.bf16.msra.mxu0 0
      %1788 = vmatprep.subr.bf16.mxu0 0
      %1789 = vmatpush1.bf16.msra.mxu0 0
      %1790 = vmatprep.subr.bf16.mxu0 0
      %1791 = vmatpush1.bf16.msra.mxu0 0
      %1792 = vmatprep.subr.bf16.mxu0 0
      %1793 = vmatpush1.bf16.msra.mxu0 0
      %1794 = vmatprep.subr.bf16.mxu0 0
      %1795 = vmatpush1.bf16.msra.mxu0 0
      %1796 = vmatprep.subr.bf16.mxu0 0
      %1797 = vmatpush1.bf16.msra.mxu0 0
      %1798 = vmatprep.subr.bf16.mxu0 0
      %1799 = vmatpush1.bf16.msra.mxu0 0
      %1800 = vmatprep.mubr.bf16.mxu0 0
      %1801 = vmatmul.mubr.bf16.gmra.mrb[0].mxu0 %v1689
      %v1802 = vpop.f32.mrb[0].mxu0
      %v1803 = vadd.f32 %v1718, %v1802
      %v1804 = vpop.f32.mrb[0].mxu0
      %v1805 = vpop.f32.mrb[0].mxu0
      %v1806 = vadd.f32 %v1718, %v1805
      %v1807 = vpop.f32.mrb[0].mxu0
      %1808 = vmatprep.mubr.bf16.mxu0 0
      %1809 = vmatmul.mubr.bf16.gmra.mrb[0].mxu0 %v1690
      %v1810 = vpop.f32.mrb[0].mxu0
      %v1811 = vadd.f32 %v1718, %v1810
      %v1812 = vpop.f32.mrb[0].mxu0
      %v1813 = vpop.f32.mrb[0].mxu0
      %v1814 = vadd.f32 %v1718, %v1813
      %v1815 = vpop.f32.mrb[0].mxu0
      %1816 = vmatprep.mubr.bf16.mxu0 0
      %1817 = vmatmul.mubr.bf16.gmra.mrb[0].mxu0 %v1691
      %v1818 = vpop.f32.mrb[0].mxu0
      %v1819 = vadd.f32 %v1718, %v1818
      %v1820 = vpop.f32.mrb[0].mxu0
      %v1821 = vpop.f32.mrb[0].mxu0
      %v1822 = vadd.f32 %v1718, %v1821
      %v1823 = vpop.f32.mrb[0].mxu0
      %1824 = vmatprep.mubr.bf16.mxu0 0
      %1825 = vmatmul.mubr.bf16.gmra.mrb[0].mxu0 %v1692
      %v1826 = vpop.f32.mrb[0].mxu0
      %v1827 = vadd.f32 %v1718, %v1826
      %v1828 = vpop.f32.mrb[0].mxu0
      %v1829 = vpop.f32.mrb[0].mxu0
      %v1830 = vadd.f32 %v1718, %v1829
      %v1831 = vpop.f32.mrb[0].mxu0
      %1832 = vmatprep.mubr.bf16.mxu0 0
      %1833 = vmatmul.mubr.bf16.gmra.mrb[0].mxu0 %v1693
      %v1834 = vpop.f32.mrb[0].mxu0
      %v1835 = vadd.f32 %v1718, %v1834
      %v1836 = vpop.f32.mrb[0].mxu0
      %v1837 = vpop.f32.mrb[0].mxu0
      %v1838 = vadd.f32 %v1718, %v1837
      %v1839 = vpop.f32.mrb[0].mxu0
      %1840 = vmatprep.mubr.bf16.mxu0 0
      %1841 = vmatmul.mubr.bf16.gmra.mrb[0].mxu0 %v1694
      %v1842 = vpop.f32.mrb[0].mxu0
      %v1843 = vadd.f32 %v1718, %v1842
      %v1844 = vpop.f32.mrb[0].mxu0
      %v1845 = vpop.f32.mrb[0].mxu0
      %v1846 = vadd.f32 %v1718, %v1845
      %v1847 = vpop.f32.mrb[0].mxu0
      %1848 = vmatprep.mubr.bf16.mxu0 0
      %1849 = vmatmul.mubr.bf16.gmra.mrb[0].mxu0 %v1695
      %v1850 = vpop.f32.mrb[0].mxu0
      %v1851 = vadd.f32 %v1718, %v1850
      %v1852 = vpop.f32.mrb[0].mxu0
      %v1853 = vpop.f32.mrb[0].mxu0
      %v1854 = vadd.f32 %v1718, %v1853
      %v1855 = vpop.f32.mrb[0].mxu0
      %1856 = vmatprep.mubr.bf16.mxu0 0
      %1857 = vmatmul.mubr.bf16.gmra.mrb[0].mxu0 %v1696
      %v1858 = vpop.f32.mrb[0].mxu0
      %v1859 = vadd.f32 %v1718, %v1858
      %v1860 = vpop.f32.mrb[0].mxu0
      %v1861 = vpop.f32.mrb[0].mxu0
      %v1862 = vadd.f32 %v1718, %v1861
      %v1863 = vpop.f32.mrb[0].mxu0
      %1864 = vdwg.mxu0
      %1865 = vst [vmem:[%s283] sm:$0xff] %v1803
      %1866 = vst [vmem:[%s283 + $0x8] sm:$0xff] %v1806
      %1867 = vst [vmem:[%s283 + $0x10] sm:$0xff] %v1811
      %1868 = vst [vmem:[%s283 + $0x18] sm:$0xff] %v1814
      %1869 = vst [vmem:[%s283 + $0x20] sm:$0xff] %v1819
      %1870 = vst [vmem:[%s283 + $0x28] sm:$0xff] %v1822
      %1871 = vst [vmem:[%s283 + $0x30] sm:$0xff] %v1827
      %1872 = vst [vmem:[%s283 + $0x38] sm:$0xff] %v1830
      %1873 = vst [vmem:[%s283 + $0x40] sm:$0xff] %v1835
      %1874 = vst [vmem:[%s283 + $0x48] sm:$0xff] %v1838
      %1875 = vst [vmem:[%s283 + $0x50] sm:$0xff] %v1843
      %1876 = vst [vmem:[%s283 + $0x58] sm:$0xff] %v1846
      %1877 = vst [vmem:[%s283 + $0x60] sm:$0xff] %v1851
      %1878 = vst [vmem:[%s283 + $0x68] sm:$0xff] %v1854
      %1879 = vst [vmem:[%s283 + $0x70] sm:$0xff] %v1859
      %1880 = vst [vmem:[%s283 + $0x78] sm:$0xff] %v1862
      %s1881 = smul.u32 16, %s18
      %p1882 = scmp.lt.s32.totalorder %s1881, 31
      %s1883 = scalar_select %p1882, %s1881, 31
      %s1884 = smul.addr %s1883, 8
      %s1885 = scalar_lea.vmem %s7, %s1884
      // Predicated region
      $region49: #{neural_net_forward.1} parent=47 // pred_check
        %p1886 = pneg %p188
      $region50: #{neural_net_forward.1} parent=47 // pred_check_branch
        %1888 = sbr.rel (%p1886) target = $region52
      $region51: #{neural_net_forward.1} parent=47 // pred_region
        %s1889 = smul.u32 16, %s18
      $region52: #{neural_net_forward.1} parent=47 // pred_fallthru
        _
    $region48: #{neural_net_forward.1} parent=5 // pred_fallthru
      _
    %p1890 = scmp.le.s32.totalorder 2, %s13
    // Predicated region
    $region53: #{neural_net_forward.1} parent=5 // pred_check
      %p1891 = pneg %p1890
    $region54: #{neural_net_forward.1} parent=5 // pred_check_branch
      %1893 = sbr.rel (%p1891) target = $region56
    $region55: #{neural_net_forward.1} parent=5 // pred_region
      %s1894 = ssub.s32 %s13, 2
      // Predicated region
      $region57: #{neural_net_forward.1} parent=55 // pred_check
        %p1895 = pneg %p194
      $region58: #{neural_net_forward.1} parent=55 // pred_check_branch
        %1897 = sbr.rel (%p1895) target = $region60
      $region59: #{neural_net_forward.1} parent=55 // pred_region
        %s1898 = smul.u32 16, %s19
        %p1899 = scmp.lt.s32.totalorder %s1898, 31
        %s1900 = scalar_select %p1899, %s1898, 31
        %s1901 = smul.addr %s1900, 8
        %s1902 = scalar_lea.vmem %s7, %s1901
      $region60: #{neural_net_forward.1} parent=55 // pred_fallthru
        _
    $region56: #{neural_net_forward.1} parent=5 // pred_fallthru
      _
  $region6: #{neural_net_forward.1} parent=0 // loop_footer
    %s17 = sadd.s32 1, %s13
  $region7: #{neural_net_forward.1} parent=0 // loop_footer_branch
    %12 = sbr.rel target = $region3
  $region8: #{neural_net_forward.1} parent=0 // loop_exit
    _

</llo_original>
